<compile_context>
chip_gen: v7x
topology: tpu7x:2x2x1
jax: 0.10.0
libtpu: 0.0.40
codegen_flags: <defaults>
</compile_context>

<pallas_src>
import functools

import jax
import jax.numpy as jnp
from jax.experimental import pallas as pl
from jax.experimental.pallas import tpu as pltpu


def _round_up(x, m):
    return (x + m - 1) // m * m


def _pick_time_chunk(T, max_chunk=64):
    tc = min(T, max_chunk)
    while T % tc:
        tc -= 1
    return tc


# ---------------------------------------------------------------------------
# Pallas kernel: both directions of one LSTM layer, grid = (direction, time_chunk).
# ---------------------------------------------------------------------------
def _bilstm_layer_kernel(xw_ref, whh_ref, out_ref, h_scr, c_scr, *, chunk):
    """One (direction, time-chunk) grid step.

    xw_ref : (1, Tc, Bp, 4H)  precomputed x @ W_ih^T + bias (input GEMM hoisted)
    whh_ref: (1, H, 4H)       recurrent weights for this direction
    out_ref: (1, Tc, Bp, H)   hidden states for this chunk (written once, chunked DMA)
    h_scr/c_scr: (Bp, H)      recurrent state carried across time chunks in VMEM
    """
    d = pl.program_id(0)   # direction: 0 = forward, 1 = backward
    t = pl.program_id(1)   # time chunk; MUST be "arbitrary" (sequential recurrence)

    @pl.when(t == 0)
    def _():
        # init_hidden(): zero initial (h, c) at the start of each direction's pass
        h_scr[...] = jnp.zeros_like(h_scr)
        c_scr[...] = jnp.zeros_like(c_scr)

    H = h_scr.shape[-1]
    whh = whh_ref[0]                       # (H, 4H), hoisted out of the time loop

    def step(s, carry):
        # forward walks the chunk left->right, backward walks it right->left
        tt = jnp.where(d == 0, s, chunk - 1 - s)
        h = h_scr[...]                     # (Bp, H)
        c = c_scr[...]
        gates = xw_ref[0, tt] + jnp.dot(h, whh, preferred_element_type=jnp.float32)
        i_g = jax.nn.sigmoid(gates[:, 0 * H:1 * H])
        f_g = jax.nn.sigmoid(gates[:, 1 * H:2 * H])
        g_g = jnp.tanh(gates[:, 2 * H:3 * H])
        o_g = jax.nn.sigmoid(gates[:, 3 * H:4 * H])
        c_new = f_g * c + i_g * g_g
        h_new = o_g * jnp.tanh(c_new)
        c_scr[...] = c_new
        h_scr[...] = h_new
        out_ref[0, tt] = h_new.astype(out_ref.dtype)
        return carry

    jax.lax.fori_loop(0, chunk, step, 0, unroll=chunk <= 32)


def bilstm_layer(xw, whh):
    """Fused bidirectional LSTM layer.

    xw : (2, T, Bp, 4H)  precomputed input pre-activations per direction
    whh: (2, H, 4H)      recurrent weights (W_hh^T) per direction
    returns (2, T, Bp, H): [0] = forward hiddens, [1] = backward hiddens (time order).
    """
    _, T, Bp, G = xw.shape
    H = whh.shape[1]
    assert G == 4 * H
    Tc = _pick_time_chunk(T)
    nT = T // Tc

    def t_idx(d, t):
        # backward direction consumes (and writes) time chunks in reverse order;
        # combined with the reversed in-chunk walk this is a full time reversal,
        # so no jnp.flip on HBM data is needed.
        return jnp.where(d == 0, t, nT - 1 - t)

    kernel = functools.partial(_bilstm_layer_kernel, chunk=Tc)
    return pl.pallas_call(
        kernel,
        out_shape=jax.ShapeDtypeStruct((2, T, Bp, H), jnp.float32),
        grid_spec=pltpu.PrefetchScalarGridSpec(
            num_scalar_prefetch=0,
            grid=(2, nT),
            in_specs=[
                pl.BlockSpec((1, Tc, Bp, 4 * H), lambda d, t: (d, t_idx(d, t), 0, 0)),
                pl.BlockSpec((1, H, 4 * H), lambda d, t: (d, 0, 0)),
            ],
            out_specs=pl.BlockSpec((1, Tc, Bp, H), lambda d, t: (d, t_idx(d, t), 0, 0)),
            scratch_shapes=[pltpu.VMEM((Bp, H), jnp.float32),   # h
                            pltpu.VMEM((Bp, H), jnp.float32)],  # c
        ),
        compiler_params=pltpu.CompilerParams(
            # direction axis is independent -> "parallel" (2 TensorCores on v7x);
            # time axis carries h/c through scratch -> it MUST stay "arbitrary".
            dimension_semantics=("parallel", "arbitrary")),
    )(xw, whh)


# ---------------------------------------------------------------------------
# Parameter construction (deterministic, synthetic). Weights stacked per direction.
# ---------------------------------------------------------------------------
def init_params(key, vocab_size, emb_size, hidden_dim, n_layers, pad_id):
    params = {}
    key, k_emb = jax.random.split(key)
    emb = jax.random.uniform(k_emb, (vocab_size, emb_size), jnp.float32, -0.1, 0.1)
    emb = emb.at[pad_id].set(0.0)          # encoder.weight.data[pad_id] = 0
    params["embedding"] = emb

    bound = 1.0 / float(hidden_dim) ** 0.5
    layers = []
    for layer in range(n_layers):
        in_size = emb_size if layer == 0 else 2 * hidden_dim
        wih, whh, bias = [], [], []
        for _direction in range(2):
            key, k1, k2, k3, k4 = jax.random.split(key, 5)
            w_ih = jax.random.uniform(k1, (4 * hidden_dim, in_size), jnp.float32, -bound, bound)
            w_hh = jax.random.uniform(k2, (4 * hidden_dim, hidden_dim), jnp.float32, -bound, bound)
            b_ih = jax.random.uniform(k3, (4 * hidden_dim,), jnp.float32, -bound, bound)
            b_hh = jax.random.uniform(k4, (4 * hidden_dim,), jnp.float32, -bound, bound)
            wih.append(w_ih.T)             # (in_size, 4H)
            whh.append(w_hh.T)             # (H, 4H)
            bias.append(b_ih + b_hh)       # (4H,)
        layers.append(dict(wih=jnp.stack(wih), whh=jnp.stack(whh), bias=jnp.stack(bias)))
    params["layers"] = layers
    return params


# ---------------------------------------------------------------------------
# Forward pass == BiLSTMEncoder.forward
# ---------------------------------------------------------------------------
def bilstm_encoder_forward(inp, params):
    """inp: (batch, seq) int32 token ids. Returns (outp, emb) like the module:
       outp: (batch, seq, 2*hidden), emb: (seq, batch, emb_size)."""
    B, _T = inp.shape
    # emb = drop(encoder(inp.transpose(0, 1)))
    emb = jnp.take(params["embedding"], inp.T, axis=0)   # (T, B, E)
    # TODO(synk): nn.Dropout / LSTM inter-layer dropout are identity (eval mode);
    # training-mode stochastic dropout is not implemented.

    # Pad batch to a full sublane group (>= 8 rows); padded rows are discarded at the end.
    Bp = max(8, _round_up(B, 8))
    xparts = jnp.pad(emb, ((0, 0), (0, Bp - B), (0, 0)))[None]   # (P=1, T, Bp, E)

    for lp in params["layers"]:
        wih, whh, bias = lp["wih"], lp["whh"], lp["bias"]        # (2,P*C,4H),(2,H,4H),(2,4H)
        P, T, _Bp, C = xparts.shape
        H = whh.shape[1]
        wih_r = wih.reshape(2, P, C, 4 * H)
        # Hoisted input GEMM: one large MXU-friendly batched matmul, bias folded in.
        # For layers > 0 this also absorbs the fwd/bwd concat (contraction over P, C).
        xw = jnp.einsum('ptbc,dpcf->dtbf', xparts, wih_r,
                        preferred_element_type=jnp.float32) + bias[:, None, None, :]
        xparts = bilstm_layer(xw, whh)                           # (2, T, Bp, H)

    fwd = xparts[0][:, :B]                                       # (T, B, H)
    bwd = xparts[1][:, :B]                                       # (T, B, H)
    outp = jnp.transpose(jnp.concatenate([fwd, bwd], axis=-1), (1, 0, 2))  # (B, T, 2H)
    return outp, emb


# ---------------------------------------------------------------------------
# Pure-JAX reference (lax.scan) for correctness check.
# ---------------------------------------------------------------------------
def _lstm_dir_ref(x, w_ih_t, w_hh_t, bias):
    T, B, _ = x.shape
    H = w_hh_t.shape[0]

    def step(carry, x_t):
        h, c = carry
        gates = x_t @ w_ih_t + h @ w_hh_t + bias[None, :]
        i = jax.nn.sigmoid(gates[:, 0 * H:1 * H])
        f = jax.nn.sigmoid(gates[:, 1 * H:2 * H])
        g = jnp.tanh(gates[:, 2 * H:3 * H])
        o = jax.nn.sigmoid(gates[:, 3 * H:4 * H])
        c = f * c + i * g
        h = o * jnp.tanh(c)
        return (h, c), h

    init = (jnp.zeros((B, H), jnp.float32), jnp.zeros((B, H), jnp.float32))
    _, hs = jax.lax.scan(step, init, x)
    return hs


def bilstm_encoder_forward_ref(inp, params):
    emb = jnp.take(params["embedding"], inp.T, axis=0)
    x = emb
    for lp in params["layers"]:
        fwd = _lstm_dir_ref(x, lp["wih"][0], lp["whh"][0], lp["bias"][0])
        bwd = jnp.flip(_lstm_dir_ref(jnp.flip(x, axis=0),
                                     lp["wih"][1], lp["whh"][1], lp["bias"][1]), axis=0)
        x = jnp.concatenate([fwd, bwd], axis=-1)
    return jnp.transpose(x, (1, 0, 2)), emb


if __name__ == "__main__":
    vocab_size, emb_size, hidden_dim, n_layers, pad_id = 50, 16, 32, 2, 0
    batch, seq = 2, 8

    key = jax.random.PRNGKey(0)
    key, k_inp = jax.random.split(key)
    params = init_params(key, vocab_size, emb_size, hidden_dim, n_layers, pad_id)
    inp = jax.random.randint(k_inp, (batch, seq), 0, vocab_size, dtype=jnp.int32)

    outp, emb = jax.jit(bilstm_encoder_forward)(inp, params)
    outp = jax.block_until_ready(outp)
    emb = jax.block_until_ready(emb)

    outp_ref, emb_ref = bilstm_encoder_forward_ref(inp, params)
    assert outp.shape == (batch, seq, 2 * hidden_dim)
    assert emb.shape == (seq, batch, emb_size)
    assert jnp.allclose(outp, outp_ref, atol=2e-5, rtol=2e-5)
    assert jnp.allclose(emb, emb_ref, atol=1e-6, rtol=1e-6)

    print("KERNEL_OK")
</pallas_src>

<mosaic_0001>
module attributes {stable_mosaic.version = 11 : i64} {
  func.func @_bilstm_layer_kernel(%arg0: i32, %arg1: i32, %arg2: memref<1x8x8x128xf32, #tpu.memory_space<vmem>>, %arg3: memref<1x32x128xf32, #tpu.memory_space<vmem>>, %arg4: memref<1x8x8x32xf32, #tpu.memory_space<vmem>>, %arg5: memref<8x32xf32, #tpu.memory_space<vmem>>, %arg6: memref<8x32xf32, #tpu.memory_space<vmem>>) attributes {dimension_semantics = [#tpu.dimension_semantics<parallel>, #tpu.dimension_semantics<arbitrary>], iteration_bounds = array<i64: 2, 1>, scalar_prefetch = 0 : i64, scratch_operands = 2 : i64, tpu.core_type = #tpu.core_type<tc>, window_params = [{transform_indices = @transform_0, window_bounds = array<i64: 1, 8, 8, 128>}, {transform_indices = @transform_1, window_bounds = array<i64: 1, 32, 128>}, {transform_indices = @transform_2, window_bounds = array<i64: 1, 8, 8, 32>}]} {
    %c0_i32 = arith.constant 0 : i32
    %0 = arith.cmpi eq, %arg1, %c0_i32 : i32
    %1 = arith.extui %0 : i1 to i32
    %c0_i32_0 = arith.constant 0 : i32
    %2 = arith.cmpi ne, %1, %c0_i32_0 : i32
    scf.if %2 {
      %cst_163 = arith.constant 0.000000e+00 : f32
      %333 = vector.broadcast %cst_163 : f32 to vector<8x32xf32>
      %c0_164 = arith.constant 0 : index
      %c0_165 = arith.constant 0 : index
      %334 = vector.load %arg5[%c0_164, %c0_165] : memref<8x32xf32, #tpu.memory_space<vmem>>, vector<8x32xf32>
      tpu.vector_store %arg5[%c0_164, %c0_165], %333 {strides = array<i32>} : memref<8x32xf32, #tpu.memory_space<vmem>>, vector<8x32xf32>,
      %cst_166 = arith.constant 0.000000e+00 : f32
      %335 = vector.broadcast %cst_166 : f32 to vector<8x32xf32>
      %c0_167 = arith.constant 0 : index
      %c0_168 = arith.constant 0 : index
      %336 = vector.load %arg6[%c0_167, %c0_168] : memref<8x32xf32, #tpu.memory_space<vmem>>, vector<8x32xf32>
      tpu.vector_store %arg6[%c0_167, %c0_168], %335 {strides = array<i32>} : memref<8x32xf32, #tpu.memory_space<vmem>>, vector<8x32xf32>,
    } else {
    }
    %c0 = arith.constant 0 : index
    %c0_1 = arith.constant 0 : index
    %c0_2 = arith.constant 0 : index
    %3 = vector.load %arg3[%c0, %c0_1, %c0_2] : memref<1x32x128xf32, #tpu.memory_space<vmem>>, vector<1x32x128xf32>
    %4 = vector.shape_cast %3 : vector<1x32x128xf32> to vector<32x128xf32>
    %c0_i32_3 = arith.constant 0 : i32
    %c0_i32_4 = arith.constant 0 : i32
    %5 = arith.cmpi eq, %arg0, %c0_i32_4 : i32
    %c7_i32 = arith.constant 7 : i32
    %6 = arith.subi %c7_i32, %c0_i32_3 : i32
    %7 = arith.select %5, %c0_i32_3, %6 : i32
    %c0_5 = arith.constant 0 : index
    %c0_6 = arith.constant 0 : index
    %8 = vector.load %arg5[%c0_5, %c0_6] : memref<8x32xf32, #tpu.memory_space<vmem>>, vector<8x32xf32>
    %c0_7 = arith.constant 0 : index
    %c0_8 = arith.constant 0 : index
    %9 = vector.load %arg6[%c0_7, %c0_8] : memref<8x32xf32, #tpu.memory_space<vmem>>, vector<8x32xf32>
    %c0_9 = arith.constant 0 : index
    %10 = arith.index_cast %7 : i32 to index
    %c0_10 = arith.constant 0 : index
    %c0_11 = arith.constant 0 : index
    %11 = vector.load %arg2[%c0_9, %10, %c0_10, %c0_11] : memref<1x8x8x128xf32, #tpu.memory_space<vmem>>, vector<1x1x8x128xf32>
    %12 = vector.shape_cast %11 : vector<1x1x8x128xf32> to vector<8x128xf32>
    %cst = arith.constant dense<0.000000e+00> : vector<8x128xf32>
    %13 = tpu.matmul %8, %4, %cst {dimension_numbers = #tpu.dot_dimension_numbers<[1], [0], [0], [1], [0, 0, 1, 1], [], []>} : vector<8x32xf32>, vector<32x128xf32>, vector<8x128xf32> -> vector<8x128xf32>
    %14 = arith.addf %12, %13 : vector<8x128xf32>
    %15 = vector.extract_strided_slice %14 {offsets = [0, 0], sizes = [8, 32], strides = [1, 1]} : vector<8x128xf32> to vector<8x32xf32>
    %16 = arith.negf %15 : vector<8x32xf32>
    %17 = math.exp %16 : vector<8x32xf32>
    %cst_12 = arith.constant 1.000000e+00 : f32
    %18 = vector.broadcast %cst_12 : f32 to vector<8x32xf32>
    %19 = arith.addf %18, %17 : vector<8x32xf32>
    %20 = arith.divf %18, %19 : vector<8x32xf32>
    %21 = vector.extract_strided_slice %14 {offsets = [0, 32], sizes = [8, 32], strides = [1, 1]} : vector<8x128xf32> to vector<8x32xf32>
    %22 = arith.negf %21 : vector<8x32xf32>
    %23 = math.exp %22 : vector<8x32xf32>
    %cst_13 = arith.constant 1.000000e+00 : f32
    %24 = vector.broadcast %cst_13 : f32 to vector<8x32xf32>
    %25 = arith.addf %24, %23 : vector<8x32xf32>
    %26 = arith.divf %24, %25 : vector<8x32xf32>
    %27 = vector.extract_strided_slice %14 {offsets = [0, 64], sizes = [8, 32], strides = [1, 1]} : vector<8x128xf32> to vector<8x32xf32>
    %28 = math.tanh %27 : vector<8x32xf32>
    %29 = vector.extract_strided_slice %14 {offsets = [0, 96], sizes = [8, 32], strides = [1, 1]} : vector<8x128xf32> to vector<8x32xf32>
    %30 = arith.negf %29 : vector<8x32xf32>
    %31 = math.exp %30 : vector<8x32xf32>
    %cst_14 = arith.constant 1.000000e+00 : f32
    %32 = vector.broadcast %cst_14 : f32 to vector<8x32xf32>
    %33 = arith.addf %32, %31 : vector<8x32xf32>
    %34 = arith.divf %32, %33 : vector<8x32xf32>
    %35 = arith.mulf %26, %9 : vector<8x32xf32>
    %36 = arith.mulf %20, %28 : vector<8x32xf32>
    %37 = arith.addf %35, %36 : vector<8x32xf32>
    %38 = math.tanh %37 : vector<8x32xf32>
    %39 = arith.mulf %34, %38 : vector<8x32xf32>
    %c0_15 = arith.constant 0 : index
    %c0_16 = arith.constant 0 : index
    %40 = vector.load %arg6[%c0_15, %c0_16] : memref<8x32xf32, #tpu.memory_space<vmem>>, vector<8x32xf32>
    tpu.vector_store %arg6[%c0_15, %c0_16], %37 {strides = array<i32>} : memref<8x32xf32, #tpu.memory_space<vmem>>, vector<8x32xf32>,
    %c0_17 = arith.constant 0 : index
    %c0_18 = arith.constant 0 : index
    %41 = vector.load %arg5[%c0_17, %c0_18] : memref<8x32xf32, #tpu.memory_space<vmem>>, vector<8x32xf32>
    tpu.vector_store %arg5[%c0_17, %c0_18], %39 {strides = array<i32>} : memref<8x32xf32, #tpu.memory_space<vmem>>, vector<8x32xf32>,
    %c0_19 = arith.constant 0 : index
    %42 = arith.index_cast %7 : i32 to index
    %c0_20 = arith.constant 0 : index
    %c0_21 = arith.constant 0 : index
    %43 = vector.load %arg4[%c0_19, %42, %c0_20, %c0_21] : memref<1x8x8x32xf32, #tpu.memory_space<vmem>>, vector<1x1x8x32xf32>
    %44 = vector.shape_cast %43 : vector<1x1x8x32xf32> to vector<8x32xf32>
    %45 = vector.shape_cast %39 : vector<8x32xf32> to vector<1x1x8x32xf32>
    tpu.vector_store %arg4[%c0_19, %42, %c0_20, %c0_21], %45 {strides = array<i32>} : memref<1x8x8x32xf32, #tpu.memory_space<vmem>>, vector<1x1x8x32xf32>,
    %c1_i32 = arith.constant 1 : i32
    %c0_i32_22 = arith.constant 0 : i32
    %46 = arith.cmpi eq, %arg0, %c0_i32_22 : i32
    %c7_i32_23 = arith.constant 7 : i32
    %47 = arith.subi %c7_i32_23, %c1_i32 : i32
    %48 = arith.select %46, %c1_i32, %47 : i32
    %c0_24 = arith.constant 0 : index
    %c0_25 = arith.constant 0 : index
    %49 = vector.load %arg5[%c0_24, %c0_25] : memref<8x32xf32, #tpu.memory_space<vmem>>, vector<8x32xf32>
    %c0_26 = arith.constant 0 : index
    %c0_27 = arith.constant 0 : index
    %50 = vector.load %arg6[%c0_26, %c0_27] : memref<8x32xf32, #tpu.memory_space<vmem>>, vector<8x32xf32>
    %c0_28 = arith.constant 0 : index
    %51 = arith.index_cast %48 : i32 to index
    %c0_29 = arith.constant 0 : index
    %c0_30 = arith.constant 0 : index
    %52 = vector.load %arg2[%c0_28, %51, %c0_29, %c0_30] : memref<1x8x8x128xf32, #tpu.memory_space<vmem>>, vector<1x1x8x128xf32>
    %53 = vector.shape_cast %52 : vector<1x1x8x128xf32> to vector<8x128xf32>
    %cst_31 = arith.constant dense<0.000000e+00> : vector<8x128xf32>
    %54 = tpu.matmul %49, %4, %cst_31 {dimension_numbers = #tpu.dot_dimension_numbers<[1], [0], [0], [1], [0, 0, 1, 1], [], []>} : vector<8x32xf32>, vector<32x128xf32>, vector<8x128xf32> -> vector<8x128xf32>
    %55 = arith.addf %53, %54 : vector<8x128xf32>
    %56 = vector.extract_strided_slice %55 {offsets = [0, 0], sizes = [8, 32], strides = [1, 1]} : vector<8x128xf32> to vector<8x32xf32>
    %57 = arith.negf %56 : vector<8x32xf32>
    %58 = math.exp %57 : vector<8x32xf32>
    %cst_32 = arith.constant 1.000000e+00 : f32
    %59 = vector.broadcast %cst_32 : f32 to vector<8x32xf32>
    %60 = arith.addf %59, %58 : vector<8x32xf32>
    %61 = arith.divf %59, %60 : vector<8x32xf32>
    %62 = vector.extract_strided_slice %55 {offsets = [0, 32], sizes = [8, 32], strides = [1, 1]} : vector<8x128xf32> to vector<8x32xf32>
    %63 = arith.negf %62 : vector<8x32xf32>
    %64 = math.exp %63 : vector<8x32xf32>
    %cst_33 = arith.constant 1.000000e+00 : f32
    %65 = vector.broadcast %cst_33 : f32 to vector<8x32xf32>
    %66 = arith.addf %65, %64 : vector<8x32xf32>
    %67 = arith.divf %65, %66 : vector<8x32xf32>
    %68 = vector.extract_strided_slice %55 {offsets = [0, 64], sizes = [8, 32], strides = [1, 1]} : vector<8x128xf32> to vector<8x32xf32>
    %69 = math.tanh %68 : vector<8x32xf32>
    %70 = vector.extract_strided_slice %55 {offsets = [0, 96], sizes = [8, 32], strides = [1, 1]} : vector<8x128xf32> to vector<8x32xf32>
    %71 = arith.negf %70 : vector<8x32xf32>
    %72 = math.exp %71 : vector<8x32xf32>
    %cst_34 = arith.constant 1.000000e+00 : f32
    %73 = vector.broadcast %cst_34 : f32 to vector<8x32xf32>
    %74 = arith.addf %73, %72 : vector<8x32xf32>
    %75 = arith.divf %73, %74 : vector<8x32xf32>
    %76 = arith.mulf %67, %50 : vector<8x32xf32>
    %77 = arith.mulf %61, %69 : vector<8x32xf32>
    %78 = arith.addf %76, %77 : vector<8x32xf32>
    %79 = math.tanh %78 : vector<8x32xf32>
    %80 = arith.mulf %75, %79 : vector<8x32xf32>
    %c0_35 = arith.constant 0 : index
    %c0_36 = arith.constant 0 : index
    %81 = vector.load %arg6[%c0_35, %c0_36] : memref<8x32xf32, #tpu.memory_space<vmem>>, vector<8x32xf32>
    tpu.vector_store %arg6[%c0_35, %c0_36], %78 {strides = array<i32>} : memref<8x32xf32, #tpu.memory_space<vmem>>, vector<8x32xf32>,
    %c0_37 = arith.constant 0 : index
    %c0_38 = arith.constant 0 : index
    %82 = vector.load %arg5[%c0_37, %c0_38] : memref<8x32xf32, #tpu.memory_space<vmem>>, vector<8x32xf32>
    tpu.vector_store %arg5[%c0_37, %c0_38], %80 {strides = array<i32>} : memref<8x32xf32, #tpu.memory_space<vmem>>, vector<8x32xf32>,
    %c0_39 = arith.constant 0 : index
    %83 = arith.index_cast %48 : i32 to index
    %c0_40 = arith.constant 0 : index
    %c0_41 = arith.constant 0 : index
    %84 = vector.load %arg4[%c0_39, %83, %c0_40, %c0_41] : memref<1x8x8x32xf32, #tpu.memory_space<vmem>>, vector<1x1x8x32xf32>
    %85 = vector.shape_cast %84 : vector<1x1x8x32xf32> to vector<8x32xf32>
    %86 = vector.shape_cast %80 : vector<8x32xf32> to vector<1x1x8x32xf32>
    tpu.vector_store %arg4[%c0_39, %83, %c0_40, %c0_41], %86 {strides = array<i32>} : memref<1x8x8x32xf32, #tpu.memory_space<vmem>>, vector<1x1x8x32xf32>,
    %c2_i32 = arith.constant 2 : i32
    %c0_i32_42 = arith.constant 0 : i32
    %87 = arith.cmpi eq, %arg0, %c0_i32_42 : i32
    %c7_i32_43 = arith.constant 7 : i32
    %88 = arith.subi %c7_i32_43, %c2_i32 : i32
    %89 = arith.select %87, %c2_i32, %88 : i32
    %c0_44 = arith.constant 0 : index
    %c0_45 = arith.constant 0 : index
    %90 = vector.load %arg5[%c0_44, %c0_45] : memref<8x32xf32, #tpu.memory_space<vmem>>, vector<8x32xf32>
    %c0_46 = arith.constant 0 : index
    %c0_47 = arith.constant 0 : index
    %91 = vector.load %arg6[%c0_46, %c0_47] : memref<8x32xf32, #tpu.memory_space<vmem>>, vector<8x32xf32>
    %c0_48 = arith.constant 0 : index
    %92 = arith.index_cast %89 : i32 to index
    %c0_49 = arith.constant 0 : index
    %c0_50 = arith.constant 0 : index
    %93 = vector.load %arg2[%c0_48, %92, %c0_49, %c0_50] : memref<1x8x8x128xf32, #tpu.memory_space<vmem>>, vector<1x1x8x128xf32>
    %94 = vector.shape_cast %93 : vector<1x1x8x128xf32> to vector<8x128xf32>
    %cst_51 = arith.constant dense<0.000000e+00> : vector<8x128xf32>
    %95 = tpu.matmul %90, %4, %cst_51 {dimension_numbers = #tpu.dot_dimension_numbers<[1], [0], [0], [1], [0, 0, 1, 1], [], []>} : vector<8x32xf32>, vector<32x128xf32>, vector<8x128xf32> -> vector<8x128xf32>
    %96 = arith.addf %94, %95 : vector<8x128xf32>
    %97 = vector.extract_strided_slice %96 {offsets = [0, 0], sizes = [8, 32], strides = [1, 1]} : vector<8x128xf32> to vector<8x32xf32>
    %98 = arith.negf %97 : vector<8x32xf32>
    %99 = math.exp %98 : vector<8x32xf32>
    %cst_52 = arith.constant 1.000000e+00 : f32
    %100 = vector.broadcast %cst_52 : f32 to vector<8x32xf32>
    %101 = arith.addf %100, %99 : vector<8x32xf32>
    %102 = arith.divf %100, %101 : vector<8x32xf32>
    %103 = vector.extract_strided_slice %96 {offsets = [0, 32], sizes = [8, 32], strides = [1, 1]} : vector<8x128xf32> to vector<8x32xf32>
    %104 = arith.negf %103 : vector<8x32xf32>
    %105 = math.exp %104 : vector<8x32xf32>
    %cst_53 = arith.constant 1.000000e+00 : f32
    %106 = vector.broadcast %cst_53 : f32 to vector<8x32xf32>
    %107 = arith.addf %106, %105 : vector<8x32xf32>
    %108 = arith.divf %106, %107 : vector<8x32xf32>
    %109 = vector.extract_strided_slice %96 {offsets = [0, 64], sizes = [8, 32], strides = [1, 1]} : vector<8x128xf32> to vector<8x32xf32>
    %110 = math.tanh %109 : vector<8x32xf32>
    %111 = vector.extract_strided_slice %96 {offsets = [0, 96], sizes = [8, 32], strides = [1, 1]} : vector<8x128xf32> to vector<8x32xf32>
    %112 = arith.negf %111 : vector<8x32xf32>
    %113 = math.exp %112 : vector<8x32xf32>
    %cst_54 = arith.constant 1.000000e+00 : f32
    %114 = vector.broadcast %cst_54 : f32 to vector<8x32xf32>
    %115 = arith.addf %114, %113 : vector<8x32xf32>
    %116 = arith.divf %114, %115 : vector<8x32xf32>
    %117 = arith.mulf %108, %91 : vector<8x32xf32>
    %118 = arith.mulf %102, %110 : vector<8x32xf32>
    %119 = arith.addf %117, %118 : vector<8x32xf32>
    %120 = math.tanh %119 : vector<8x32xf32>
    %121 = arith.mulf %116, %120 : vector<8x32xf32>
    %c0_55 = arith.constant 0 : index
    %c0_56 = arith.constant 0 : index
    %122 = vector.load %arg6[%c0_55, %c0_56] : memref<8x32xf32, #tpu.memory_space<vmem>>, vector<8x32xf32>
    tpu.vector_store %arg6[%c0_55, %c0_56], %119 {strides = array<i32>} : memref<8x32xf32, #tpu.memory_space<vmem>>, vector<8x32xf32>,
    %c0_57 = arith.constant 0 : index
    %c0_58 = arith.constant 0 : index
    %123 = vector.load %arg5[%c0_57, %c0_58] : memref<8x32xf32, #tpu.memory_space<vmem>>, vector<8x32xf32>
    tpu.vector_store %arg5[%c0_57, %c0_58], %121 {strides = array<i32>} : memref<8x32xf32, #tpu.memory_space<vmem>>, vector<8x32xf32>,
    %c0_59 = arith.constant 0 : index
    %124 = arith.index_cast %89 : i32 to index
    %c0_60 = arith.constant 0 : index
    %c0_61 = arith.constant 0 : index
    %125 = vector.load %arg4[%c0_59, %124, %c0_60, %c0_61] : memref<1x8x8x32xf32, #tpu.memory_space<vmem>>, vector<1x1x8x32xf32>
    %126 = vector.shape_cast %125 : vector<1x1x8x32xf32> to vector<8x32xf32>
    %127 = vector.shape_cast %121 : vector<8x32xf32> to vector<1x1x8x32xf32>
    tpu.vector_store %arg4[%c0_59, %124, %c0_60, %c0_61], %127 {strides = array<i32>} : memref<1x8x8x32xf32, #tpu.memory_space<vmem>>, vector<1x1x8x32xf32>,
    %c3_i32 = arith.constant 3 : i32
    %c0_i32_62 = arith.constant 0 : i32
    %128 = arith.cmpi eq, %arg0, %c0_i32_62 : i32
    %c7_i32_63 = arith.constant 7 : i32
    %129 = arith.subi %c7_i32_63, %c3_i32 : i32
    %130 = arith.select %128, %c3_i32, %129 : i32
    %c0_64 = arith.constant 0 : index
    %c0_65 = arith.constant 0 : index
    %131 = vector.load %arg5[%c0_64, %c0_65] : memref<8x32xf32, #tpu.memory_space<vmem>>, vector<8x32xf32>
    %c0_66 = arith.constant 0 : index
    %c0_67 = arith.constant 0 : index
    %132 = vector.load %arg6[%c0_66, %c0_67] : memref<8x32xf32, #tpu.memory_space<vmem>>, vector<8x32xf32>
    %c0_68 = arith.constant 0 : index
    %133 = arith.index_cast %130 : i32 to index
    %c0_69 = arith.constant 0 : index
    %c0_70 = arith.constant 0 : index
    %134 = vector.load %arg2[%c0_68, %133, %c0_69, %c0_70] : memref<1x8x8x128xf32, #tpu.memory_space<vmem>>, vector<1x1x8x128xf32>
    %135 = vector.shape_cast %134 : vector<1x1x8x128xf32> to vector<8x128xf32>
    %cst_71 = arith.constant dense<0.000000e+00> : vector<8x128xf32>
    %136 = tpu.matmul %131, %4, %cst_71 {dimension_numbers = #tpu.dot_dimension_numbers<[1], [0], [0], [1], [0, 0, 1, 1], [], []>} : vector<8x32xf32>, vector<32x128xf32>, vector<8x128xf32> -> vector<8x128xf32>
    %137 = arith.addf %135, %136 : vector<8x128xf32>
    %138 = vector.extract_strided_slice %137 {offsets = [0, 0], sizes = [8, 32], strides = [1, 1]} : vector<8x128xf32> to vector<8x32xf32>
    %139 = arith.negf %138 : vector<8x32xf32>
    %140 = math.exp %139 : vector<8x32xf32>
    %cst_72 = arith.constant 1.000000e+00 : f32
    %141 = vector.broadcast %cst_72 : f32 to vector<8x32xf32>
    %142 = arith.addf %141, %140 : vector<8x32xf32>
    %143 = arith.divf %141, %142 : vector<8x32xf32>
    %144 = vector.extract_strided_slice %137 {offsets = [0, 32], sizes = [8, 32], strides = [1, 1]} : vector<8x128xf32> to vector<8x32xf32>
    %145 = arith.negf %144 : vector<8x32xf32>
    %146 = math.exp %145 : vector<8x32xf32>
    %cst_73 = arith.constant 1.000000e+00 : f32
    %147 = vector.broadcast %cst_73 : f32 to vector<8x32xf32>
    %148 = arith.addf %147, %146 : vector<8x32xf32>
    %149 = arith.divf %147, %148 : vector<8x32xf32>
    %150 = vector.extract_strided_slice %137 {offsets = [0, 64], sizes = [8, 32], strides = [1, 1]} : vector<8x128xf32> to vector<8x32xf32>
    %151 = math.tanh %150 : vector<8x32xf32>
    %152 = vector.extract_strided_slice %137 {offsets = [0, 96], sizes = [8, 32], strides = [1, 1]} : vector<8x128xf32> to vector<8x32xf32>
    %153 = arith.negf %152 : vector<8x32xf32>
    %154 = math.exp %153 : vector<8x32xf32>
    %cst_74 = arith.constant 1.000000e+00 : f32
    %155 = vector.broadcast %cst_74 : f32 to vector<8x32xf32>
    %156 = arith.addf %155, %154 : vector<8x32xf32>
    %157 = arith.divf %155, %156 : vector<8x32xf32>
    %158 = arith.mulf %149, %132 : vector<8x32xf32>
    %159 = arith.mulf %143, %151 : vector<8x32xf32>
    %160 = arith.addf %158, %159 : vector<8x32xf32>
    %161 = math.tanh %160 : vector<8x32xf32>
    %162 = arith.mulf %157, %161 : vector<8x32xf32>
    %c0_75 = arith.constant 0 : index
    %c0_76 = arith.constant 0 : index
    %163 = vector.load %arg6[%c0_75, %c0_76] : memref<8x32xf32, #tpu.memory_space<vmem>>, vector<8x32xf32>
    tpu.vector_store %arg6[%c0_75, %c0_76], %160 {strides = array<i32>} : memref<8x32xf32, #tpu.memory_space<vmem>>, vector<8x32xf32>,
    %c0_77 = arith.constant 0 : index
    %c0_78 = arith.constant 0 : index
    %164 = vector.load %arg5[%c0_77, %c0_78] : memref<8x32xf32, #tpu.memory_space<vmem>>, vector<8x32xf32>
    tpu.vector_store %arg5[%c0_77, %c0_78], %162 {strides = array<i32>} : memref<8x32xf32, #tpu.memory_space<vmem>>, vector<8x32xf32>,
    %c0_79 = arith.constant 0 : index
    %165 = arith.index_cast %130 : i32 to index
    %c0_80 = arith.constant 0 : index
    %c0_81 = arith.constant 0 : index
    %166 = vector.load %arg4[%c0_79, %165, %c0_80, %c0_81] : memref<1x8x8x32xf32, #tpu.memory_space<vmem>>, vector<1x1x8x32xf32>
    %167 = vector.shape_cast %166 : vector<1x1x8x32xf32> to vector<8x32xf32>
    %168 = vector.shape_cast %162 : vector<8x32xf32> to vector<1x1x8x32xf32>
    tpu.vector_store %arg4[%c0_79, %165, %c0_80, %c0_81], %168 {strides = array<i32>} : memref<1x8x8x32xf32, #tpu.memory_space<vmem>>, vector<1x1x8x32xf32>,
    %c4_i32 = arith.constant 4 : i32
    %c0_i32_82 = arith.constant 0 : i32
    %169 = arith.cmpi eq, %arg0, %c0_i32_82 : i32
    %c7_i32_83 = arith.constant 7 : i32
    %170 = arith.subi %c7_i32_83, %c4_i32 : i32
    %171 = arith.select %169, %c4_i32, %170 : i32
    %c0_84 = arith.constant 0 : index
    %c0_85 = arith.constant 0 : index
    %172 = vector.load %arg5[%c0_84, %c0_85] : memref<8x32xf32, #tpu.memory_space<vmem>>, vector<8x32xf32>
    %c0_86 = arith.constant 0 : index
    %c0_87 = arith.constant 0 : index
    %173 = vector.load %arg6[%c0_86, %c0_87] : memref<8x32xf32, #tpu.memory_space<vmem>>, vector<8x32xf32>
    %c0_88 = arith.constant 0 : index
    %174 = arith.index_cast %171 : i32 to index
    %c0_89 = arith.constant 0 : index
    %c0_90 = arith.constant 0 : index
    %175 = vector.load %arg2[%c0_88, %174, %c0_89, %c0_90] : memref<1x8x8x128xf32, #tpu.memory_space<vmem>>, vector<1x1x8x128xf32>
    %176 = vector.shape_cast %175 : vector<1x1x8x128xf32> to vector<8x128xf32>
    %cst_91 = arith.constant dense<0.000000e+00> : vector<8x128xf32>
    %177 = tpu.matmul %172, %4, %cst_91 {dimension_numbers = #tpu.dot_dimension_numbers<[1], [0], [0], [1], [0, 0, 1, 1], [], []>} : vector<8x32xf32>, vector<32x128xf32>, vector<8x128xf32> -> vector<8x128xf32>
    %178 = arith.addf %176, %177 : vector<8x128xf32>
    %179 = vector.extract_strided_slice %178 {offsets = [0, 0], sizes = [8, 32], strides = [1, 1]} : vector<8x128xf32> to vector<8x32xf32>
    %180 = arith.negf %179 : vector<8x32xf32>
    %181 = math.exp %180 : vector<8x32xf32>
    %cst_92 = arith.constant 1.000000e+00 : f32
    %182 = vector.broadcast %cst_92 : f32 to vector<8x32xf32>
    %183 = arith.addf %182, %181 : vector<8x32xf32>
    %184 = arith.divf %182, %183 : vector<8x32xf32>
    %185 = vector.extract_strided_slice %178 {offsets = [0, 32], sizes = [8, 32], strides = [1, 1]} : vector<8x128xf32> to vector<8x32xf32>
    %186 = arith.negf %185 : vector<8x32xf32>
    %187 = math.exp %186 : vector<8x32xf32>
    %cst_93 = arith.constant 1.000000e+00 : f32
    %188 = vector.broadcast %cst_93 : f32 to vector<8x32xf32>
    %189 = arith.addf %188, %187 : vector<8x32xf32>
    %190 = arith.divf %188, %189 : vector<8x32xf32>
    %191 = vector.extract_strided_slice %178 {offsets = [0, 64], sizes = [8, 32], strides = [1, 1]} : vector<8x128xf32> to vector<8x32xf32>
    %192 = math.tanh %191 : vector<8x32xf32>
    %193 = vector.extract_strided_slice %178 {offsets = [0, 96], sizes = [8, 32], strides = [1, 1]} : vector<8x128xf32> to vector<8x32xf32>
    %194 = arith.negf %193 : vector<8x32xf32>
    %195 = math.exp %194 : vector<8x32xf32>
    %cst_94 = arith.constant 1.000000e+00 : f32
    %196 = vector.broadcast %cst_94 : f32 to vector<8x32xf32>
    %197 = arith.addf %196, %195 : vector<8x32xf32>
    %198 = arith.divf %196, %197 : vector<8x32xf32>
    %199 = arith.mulf %190, %173 : vector<8x32xf32>
    %200 = arith.mulf %184, %192 : vector<8x32xf32>
    %201 = arith.addf %199, %200 : vector<8x32xf32>
    %202 = math.tanh %201 : vector<8x32xf32>
    %203 = arith.mulf %198, %202 : vector<8x32xf32>
    %c0_95 = arith.constant 0 : index
    %c0_96 = arith.constant 0 : index
    %204 = vector.load %arg6[%c0_95, %c0_96] : memref<8x32xf32, #tpu.memory_space<vmem>>, vector<8x32xf32>
    tpu.vector_store %arg6[%c0_95, %c0_96], %201 {strides = array<i32>} : memref<8x32xf32, #tpu.memory_space<vmem>>, vector<8x32xf32>,
    %c0_97 = arith.constant 0 : index
    %c0_98 = arith.constant 0 : index
    %205 = vector.load %arg5[%c0_97, %c0_98] : memref<8x32xf32, #tpu.memory_space<vmem>>, vector<8x32xf32>
    tpu.vector_store %arg5[%c0_97, %c0_98], %203 {strides = array<i32>} : memref<8x32xf32, #tpu.memory_space<vmem>>, vector<8x32xf32>,
    %c0_99 = arith.constant 0 : index
    %206 = arith.index_cast %171 : i32 to index
    %c0_100 = arith.constant 0 : index
    %c0_101 = arith.constant 0 : index
    %207 = vector.load %arg4[%c0_99, %206, %c0_100, %c0_101] : memref<1x8x8x32xf32, #tpu.memory_space<vmem>>, vector<1x1x8x32xf32>
    %208 = vector.shape_cast %207 : vector<1x1x8x32xf32> to vector<8x32xf32>
    %209 = vector.shape_cast %203 : vector<8x32xf32> to vector<1x1x8x32xf32>
    tpu.vector_store %arg4[%c0_99, %206, %c0_100, %c0_101], %209 {strides = array<i32>} : memref<1x8x8x32xf32, #tpu.memory_space<vmem>>, vector<1x1x8x32xf32>,
    %c5_i32 = arith.constant 5 : i32
    %c0_i32_102 = arith.constant 0 : i32
    %210 = arith.cmpi eq, %arg0, %c0_i32_102 : i32
    %c7_i32_103 = arith.constant 7 : i32
    %211 = arith.subi %c7_i32_103, %c5_i32 : i32
    %212 = arith.select %210, %c5_i32, %211 : i32
    %c0_104 = arith.constant 0 : index
    %c0_105 = arith.constant 0 : index
    %213 = vector.load %arg5[%c0_104, %c0_105] : memref<8x32xf32, #tpu.memory_space<vmem>>, vector<8x32xf32>
    %c0_106 = arith.constant 0 : index
    %c0_107 = arith.constant 0 : index
    %214 = vector.load %arg6[%c0_106, %c0_107] : memref<8x32xf32, #tpu.memory_space<vmem>>, vector<8x32xf32>
    %c0_108 = arith.constant 0 : index
    %215 = arith.index_cast %212 : i32 to index
    %c0_109 = arith.constant 0 : index
    %c0_110 = arith.constant 0 : index
    %216 = vector.load %arg2[%c0_108, %215, %c0_109, %c0_110] : memref<1x8x8x128xf32, #tpu.memory_space<vmem>>, vector<1x1x8x128xf32>
    %217 = vector.shape_cast %216 : vector<1x1x8x128xf32> to vector<8x128xf32>
    %cst_111 = arith.constant dense<0.000000e+00> : vector<8x128xf32>
    %218 = tpu.matmul %213, %4, %cst_111 {dimension_numbers = #tpu.dot_dimension_numbers<[1], [0], [0], [1], [0, 0, 1, 1], [], []>} : vector<8x32xf32>, vector<32x128xf32>, vector<8x128xf32> -> vector<8x128xf32>
    %219 = arith.addf %217, %218 : vector<8x128xf32>
    %220 = vector.extract_strided_slice %219 {offsets = [0, 0], sizes = [8, 32], strides = [1, 1]} : vector<8x128xf32> to vector<8x32xf32>
    %221 = arith.negf %220 : vector<8x32xf32>
    %222 = math.exp %221 : vector<8x32xf32>
    %cst_112 = arith.constant 1.000000e+00 : f32
    %223 = vector.broadcast %cst_112 : f32 to vector<8x32xf32>
    %224 = arith.addf %223, %222 : vector<8x32xf32>
    %225 = arith.divf %223, %224 : vector<8x32xf32>
    %226 = vector.extract_strided_slice %219 {offsets = [0, 32], sizes = [8, 32], strides = [1, 1]} : vector<8x128xf32> to vector<8x32xf32>
    %227 = arith.negf %226 : vector<8x32xf32>
    %228 = math.exp %227 : vector<8x32xf32>
    %cst_113 = arith.constant 1.000000e+00 : f32
    %229 = vector.broadcast %cst_113 : f32 to vector<8x32xf32>
    %230 = arith.addf %229, %228 : vector<8x32xf32>
    %231 = arith.divf %229, %230 : vector<8x32xf32>
    %232 = vector.extract_strided_slice %219 {offsets = [0, 64], sizes = [8, 32], strides = [1, 1]} : vector<8x128xf32> to vector<8x32xf32>
    %233 = math.tanh %232 : vector<8x32xf32>
    %234 = vector.extract_strided_slice %219 {offsets = [0, 96], sizes = [8, 32], strides = [1, 1]} : vector<8x128xf32> to vector<8x32xf32>
    %235 = arith.negf %234 : vector<8x32xf32>
    %236 = math.exp %235 : vector<8x32xf32>
    %cst_114 = arith.constant 1.000000e+00 : f32
    %237 = vector.broadcast %cst_114 : f32 to vector<8x32xf32>
    %238 = arith.addf %237, %236 : vector<8x32xf32>
    %239 = arith.divf %237, %238 : vector<8x32xf32>
    %240 = arith.mulf %231, %214 : vector<8x32xf32>
    %241 = arith.mulf %225, %233 : vector<8x32xf32>
    %242 = arith.addf %240, %241 : vector<8x32xf32>
    %243 = math.tanh %242 : vector<8x32xf32>
    %244 = arith.mulf %239, %243 : vector<8x32xf32>
    %c0_115 = arith.constant 0 : index
    %c0_116 = arith.constant 0 : index
    %245 = vector.load %arg6[%c0_115, %c0_116] : memref<8x32xf32, #tpu.memory_space<vmem>>, vector<8x32xf32>
    tpu.vector_store %arg6[%c0_115, %c0_116], %242 {strides = array<i32>} : memref<8x32xf32, #tpu.memory_space<vmem>>, vector<8x32xf32>,
    %c0_117 = arith.constant 0 : index
    %c0_118 = arith.constant 0 : index
    %246 = vector.load %arg5[%c0_117, %c0_118] : memref<8x32xf32, #tpu.memory_space<vmem>>, vector<8x32xf32>
    tpu.vector_store %arg5[%c0_117, %c0_118], %244 {strides = array<i32>} : memref<8x32xf32, #tpu.memory_space<vmem>>, vector<8x32xf32>,
    %c0_119 = arith.constant 0 : index
    %247 = arith.index_cast %212 : i32 to index
    %c0_120 = arith.constant 0 : index
    %c0_121 = arith.constant 0 : index
    %248 = vector.load %arg4[%c0_119, %247, %c0_120, %c0_121] : memref<1x8x8x32xf32, #tpu.memory_space<vmem>>, vector<1x1x8x32xf32>
    %249 = vector.shape_cast %248 : vector<1x1x8x32xf32> to vector<8x32xf32>
    %250 = vector.shape_cast %244 : vector<8x32xf32> to vector<1x1x8x32xf32>
    tpu.vector_store %arg4[%c0_119, %247, %c0_120, %c0_121], %250 {strides = array<i32>} : memref<1x8x8x32xf32, #tpu.memory_space<vmem>>, vector<1x1x8x32xf32>,
    %c6_i32 = arith.constant 6 : i32
    %c0_i32_122 = arith.constant 0 : i32
    %251 = arith.cmpi eq, %arg0, %c0_i32_122 : i32
    %c7_i32_123 = arith.constant 7 : i32
    %252 = arith.subi %c7_i32_123, %c6_i32 : i32
    %253 = arith.select %251, %c6_i32, %252 : i32
    %c0_124 = arith.constant 0 : index
    %c0_125 = arith.constant 0 : index
    %254 = vector.load %arg5[%c0_124, %c0_125] : memref<8x32xf32, #tpu.memory_space<vmem>>, vector<8x32xf32>
    %c0_126 = arith.constant 0 : index
    %c0_127 = arith.constant 0 : index
    %255 = vector.load %arg6[%c0_126, %c0_127] : memref<8x32xf32, #tpu.memory_space<vmem>>, vector<8x32xf32>
    %c0_128 = arith.constant 0 : index
    %256 = arith.index_cast %253 : i32 to index
    %c0_129 = arith.constant 0 : index
    %c0_130 = arith.constant 0 : index
    %257 = vector.load %arg2[%c0_128, %256, %c0_129, %c0_130] : memref<1x8x8x128xf32, #tpu.memory_space<vmem>>, vector<1x1x8x128xf32>
    %258 = vector.shape_cast %257 : vector<1x1x8x128xf32> to vector<8x128xf32>
    %cst_131 = arith.constant dense<0.000000e+00> : vector<8x128xf32>
    %259 = tpu.matmul %254, %4, %cst_131 {dimension_numbers = #tpu.dot_dimension_numbers<[1], [0], [0], [1], [0, 0, 1, 1], [], []>} : vector<8x32xf32>, vector<32x128xf32>, vector<8x128xf32> -> vector<8x128xf32>
    %260 = arith.addf %258, %259 : vector<8x128xf32>
    %261 = vector.extract_strided_slice %260 {offsets = [0, 0], sizes = [8, 32], strides = [1, 1]} : vector<8x128xf32> to vector<8x32xf32>
    %262 = arith.negf %261 : vector<8x32xf32>
    %263 = math.exp %262 : vector<8x32xf32>
    %cst_132 = arith.constant 1.000000e+00 : f32
    %264 = vector.broadcast %cst_132 : f32 to vector<8x32xf32>
    %265 = arith.addf %264, %263 : vector<8x32xf32>
    %266 = arith.divf %264, %265 : vector<8x32xf32>
    %267 = vector.extract_strided_slice %260 {offsets = [0, 32], sizes = [8, 32], strides = [1, 1]} : vector<8x128xf32> to vector<8x32xf32>
    %268 = arith.negf %267 : vector<8x32xf32>
    %269 = math.exp %268 : vector<8x32xf32>
    %cst_133 = arith.constant 1.000000e+00 : f32
    %270 = vector.broadcast %cst_133 : f32 to vector<8x32xf32>
    %271 = arith.addf %270, %269 : vector<8x32xf32>
    %272 = arith.divf %270, %271 : vector<8x32xf32>
    %273 = vector.extract_strided_slice %260 {offsets = [0, 64], sizes = [8, 32], strides = [1, 1]} : vector<8x128xf32> to vector<8x32xf32>
    %274 = math.tanh %273 : vector<8x32xf32>
    %275 = vector.extract_strided_slice %260 {offsets = [0, 96], sizes = [8, 32], strides = [1, 1]} : vector<8x128xf32> to vector<8x32xf32>
    %276 = arith.negf %275 : vector<8x32xf32>
    %277 = math.exp %276 : vector<8x32xf32>
    %cst_134 = arith.constant 1.000000e+00 : f32
    %278 = vector.broadcast %cst_134 : f32 to vector<8x32xf32>
    %279 = arith.addf %278, %277 : vector<8x32xf32>
    %280 = arith.divf %278, %279 : vector<8x32xf32>
    %281 = arith.mulf %272, %255 : vector<8x32xf32>
    %282 = arith.mulf %266, %274 : vector<8x32xf32>
    %283 = arith.addf %281, %282 : vector<8x32xf32>
    %284 = math.tanh %283 : vector<8x32xf32>
    %285 = arith.mulf %280, %284 : vector<8x32xf32>
    %c0_135 = arith.constant 0 : index
    %c0_136 = arith.constant 0 : index
    %286 = vector.load %arg6[%c0_135, %c0_136] : memref<8x32xf32, #tpu.memory_space<vmem>>, vector<8x32xf32>
    tpu.vector_store %arg6[%c0_135, %c0_136], %283 {strides = array<i32>} : memref<8x32xf32, #tpu.memory_space<vmem>>, vector<8x32xf32>,
    %c0_137 = arith.constant 0 : index
    %c0_138 = arith.constant 0 : index
    %287 = vector.load %arg5[%c0_137, %c0_138] : memref<8x32xf32, #tpu.memory_space<vmem>>, vector<8x32xf32>
    tpu.vector_store %arg5[%c0_137, %c0_138], %285 {strides = array<i32>} : memref<8x32xf32, #tpu.memory_space<vmem>>, vector<8x32xf32>,
    %c0_139 = arith.constant 0 : index
    %288 = arith.index_cast %253 : i32 to index
    %c0_140 = arith.constant 0 : index
    %c0_141 = arith.constant 0 : index
    %289 = vector.load %arg4[%c0_139, %288, %c0_140, %c0_141] : memref<1x8x8x32xf32, #tpu.memory_space<vmem>>, vector<1x1x8x32xf32>
    %290 = vector.shape_cast %289 : vector<1x1x8x32xf32> to vector<8x32xf32>
    %291 = vector.shape_cast %285 : vector<8x32xf32> to vector<1x1x8x32xf32>
    tpu.vector_store %arg4[%c0_139, %288, %c0_140, %c0_141], %291 {strides = array<i32>} : memref<1x8x8x32xf32, #tpu.memory_space<vmem>>, vector<1x1x8x32xf32>,
    %c7_i32_142 = arith.constant 7 : i32
    %c0_i32_143 = arith.constant 0 : i32
    %292 = arith.cmpi eq, %arg0, %c0_i32_143 : i32
    %c7_i32_144 = arith.constant 7 : i32
    %293 = arith.subi %c7_i32_144, %c7_i32_142 : i32
    %294 = arith.select %292, %c7_i32_142, %293 : i32
    %c0_145 = arith.constant 0 : index
    %c0_146 = arith.constant 0 : index
    %295 = vector.load %arg5[%c0_145, %c0_146] : memref<8x32xf32, #tpu.memory_space<vmem>>, vector<8x32xf32>
    %c0_147 = arith.constant 0 : index
    %c0_148 = arith.constant 0 : index
    %296 = vector.load %arg6[%c0_147, %c0_148] : memref<8x32xf32, #tpu.memory_space<vmem>>, vector<8x32xf32>
    %c0_149 = arith.constant 0 : index
    %297 = arith.index_cast %294 : i32 to index
    %c0_150 = arith.constant 0 : index
    %c0_151 = arith.constant 0 : index
    %298 = vector.load %arg2[%c0_149, %297, %c0_150, %c0_151] : memref<1x8x8x128xf32, #tpu.memory_space<vmem>>, vector<1x1x8x128xf32>
    %299 = vector.shape_cast %298 : vector<1x1x8x128xf32> to vector<8x128xf32>
    %cst_152 = arith.constant dense<0.000000e+00> : vector<8x128xf32>
    %300 = tpu.matmul %295, %4, %cst_152 {dimension_numbers = #tpu.dot_dimension_numbers<[1], [0], [0], [1], [0, 0, 1, 1], [], []>} : vector<8x32xf32>, vector<32x128xf32>, vector<8x128xf32> -> vector<8x128xf32>
    %301 = arith.addf %299, %300 : vector<8x128xf32>
    %302 = vector.extract_strided_slice %301 {offsets = [0, 0], sizes = [8, 32], strides = [1, 1]} : vector<8x128xf32> to vector<8x32xf32>
    %303 = arith.negf %302 : vector<8x32xf32>
    %304 = math.exp %303 : vector<8x32xf32>
    %cst_153 = arith.constant 1.000000e+00 : f32
    %305 = vector.broadcast %cst_153 : f32 to vector<8x32xf32>
    %306 = arith.addf %305, %304 : vector<8x32xf32>
    %307 = arith.divf %305, %306 : vector<8x32xf32>
    %308 = vector.extract_strided_slice %301 {offsets = [0, 32], sizes = [8, 32], strides = [1, 1]} : vector<8x128xf32> to vector<8x32xf32>
    %309 = arith.negf %308 : vector<8x32xf32>
    %310 = math.exp %309 : vector<8x32xf32>
    %cst_154 = arith.constant 1.000000e+00 : f32
    %311 = vector.broadcast %cst_154 : f32 to vector<8x32xf32>
    %312 = arith.addf %311, %310 : vector<8x32xf32>
    %313 = arith.divf %311, %312 : vector<8x32xf32>
    %314 = vector.extract_strided_slice %301 {offsets = [0, 64], sizes = [8, 32], strides = [1, 1]} : vector<8x128xf32> to vector<8x32xf32>
    %315 = math.tanh %314 : vector<8x32xf32>
    %316 = vector.extract_strided_slice %301 {offsets = [0, 96], sizes = [8, 32], strides = [1, 1]} : vector<8x128xf32> to vector<8x32xf32>
    %317 = arith.negf %316 : vector<8x32xf32>
    %318 = math.exp %317 : vector<8x32xf32>
    %cst_155 = arith.constant 1.000000e+00 : f32
    %319 = vector.broadcast %cst_155 : f32 to vector<8x32xf32>
    %320 = arith.addf %319, %318 : vector<8x32xf32>
    %321 = arith.divf %319, %320 : vector<8x32xf32>
    %322 = arith.mulf %313, %296 : vector<8x32xf32>
    %323 = arith.mulf %307, %315 : vector<8x32xf32>
    %324 = arith.addf %322, %323 : vector<8x32xf32>
    %325 = math.tanh %324 : vector<8x32xf32>
    %326 = arith.mulf %321, %325 : vector<8x32xf32>
    %c0_156 = arith.constant 0 : index
    %c0_157 = arith.constant 0 : index
    %327 = vector.load %arg6[%c0_156, %c0_157] : memref<8x32xf32, #tpu.memory_space<vmem>>, vector<8x32xf32>
    tpu.vector_store %arg6[%c0_156, %c0_157], %324 {strides = array<i32>} : memref<8x32xf32, #tpu.memory_space<vmem>>, vector<8x32xf32>,
    %c0_158 = arith.constant 0 : index
    %c0_159 = arith.constant 0 : index
    %328 = vector.load %arg5[%c0_158, %c0_159] : memref<8x32xf32, #tpu.memory_space<vmem>>, vector<8x32xf32>
    tpu.vector_store %arg5[%c0_158, %c0_159], %326 {strides = array<i32>} : memref<8x32xf32, #tpu.memory_space<vmem>>, vector<8x32xf32>,
    %c0_160 = arith.constant 0 : index
    %329 = arith.index_cast %294 : i32 to index
    %c0_161 = arith.constant 0 : index
    %c0_162 = arith.constant 0 : index
    %330 = vector.load %arg4[%c0_160, %329, %c0_161, %c0_162] : memref<1x8x8x32xf32, #tpu.memory_space<vmem>>, vector<1x1x8x32xf32>
    %331 = vector.shape_cast %330 : vector<1x1x8x32xf32> to vector<8x32xf32>
    %332 = vector.shape_cast %326 : vector<8x32xf32> to vector<1x1x8x32xf32>
    tpu.vector_store %arg4[%c0_160, %329, %c0_161, %c0_162], %332 {strides = array<i32>} : memref<1x8x8x32xf32, #tpu.memory_space<vmem>>, vector<1x1x8x32xf32>,
    %c8_i32 = arith.constant 8 : i32
    return
  }
  func.func @transform_0(%arg0: i32, %arg1: i32) -> (i32, i32, i32, i32) {
    %c0_i32 = arith.constant 0 : i32
    %0 = arith.cmpi eq, %arg0, %c0_i32 : i32
    %c0_i32_0 = arith.constant 0 : i32
    %1 = arith.subi %c0_i32_0, %arg1 : i32
    %2 = arith.select %0, %arg1, %1 : i32
    %c0_i32_1 = arith.constant 0 : i32
    %c0_i32_2 = arith.constant 0 : i32
    %c0_i32_3 = arith.constant 0 : i32
    return %arg0, %2, %c0_i32_1, %c0_i32_2 : i32, i32, i32, i32
  }
  func.func @transform_1(%arg0: i32, %arg1: i32) -> (i32, i32, i32) {
    %c0_i32 = arith.constant 0 : i32
    %c0_i32_0 = arith.constant 0 : i32
    %c0_i32_1 = arith.constant 0 : i32
    return %arg0, %c0_i32, %c0_i32_0 : i32, i32, i32
  }
  func.func @transform_2(%arg0: i32, %arg1: i32) -> (i32, i32, i32, i32) {
    %c0_i32 = arith.constant 0 : i32
    %0 = arith.cmpi eq, %arg0, %c0_i32 : i32
    %c0_i32_0 = arith.constant 0 : i32
    %1 = arith.subi %c0_i32_0, %arg1 : i32
    %2 = arith.select %0, %arg1, %1 : i32
    %c0_i32_1 = arith.constant 0 : i32
    %c0_i32_2 = arith.constant 0 : i32
    %c0_i32_3 = arith.constant 0 : i32
    return %arg0, %2, %c0_i32_1, %c0_i32_2 : i32, i32, i32, i32
  }
}

</mosaic_0001>

<llo_original>
// kernel: bilstm_encoder_forward.2
$region0: #{bilstm_encoder_forward.2}
  #allocation0 [shape = 'u32[]', space=smem, size = 0x4, offset = 0x4, fixed_abs, tag = 'smem constant byte address 0x4 - core index']
  #allocation1 [shape = 'u32[144,128]{1,0:T(1,128)}', space=vmem, size = 0x12000, scoped, tag = 'internal scratch']
  #allocation2 [shape = 'f32[8,32]{1,0:T(8,128)}', space=vmem, size = 0x1000, scoped, tag = 'scratch operand']
  #allocation3 [shape = 'f32[8,32]{1,0:T(8,128)}', space=vmem, size = 0x1000, scoped, tag = 'scratch operand']
  %s0 = inlined_call_operand.vmem [shape: f32[2,8,8,128], index: 0, kind: input, shape index: {}]
  %s1 = inlined_call_operand.vmem [shape: f32[2,32,128], index: 1, kind: input, shape index: {}]
  %s2 = inlined_call_operand.vmem [shape: f32[2,8,8,32], index: 2, kind: output, shape index: {}]
  %s3 = sld [smem:[#allocation0]]
  $region45: #{bilstm_encoder_forward.2} parent=0
    _
  %s5 = ssub.s32 1, %s3
  %s6 = scalar_select 0, %s5, %s3
  loop: start=0, step=1, limit=4
  $region2: #{bilstm_encoder_forward.2} parent=0 // loop_pre_header
    _
  $region3: #{bilstm_encoder_forward.2} parent=0 // loop_header
    %s8 = sphi 0, %s12
    %p9 = scmp.ge.s32.totalorder %s8, 4
    %s15 = sphi 0, %s27
    %s16 = sphi 0, %s23
    %s17 = sphi 0, %s15
    %s18 = sphi 0, %s16
    %s19 = sphi 0, %s17
    %s20 = sphi 0, %s18
    %s38 = sphi 0, %s40
    %s41 = sphi 0, %s38
    %s42 = sphi 0, %s41
    %s58 = sphi 0, %s42
    %s64 = sphi 0, %s66
    %s67 = sphi 0, %s64
    %s68 = sphi 0, %s67
    %s84 = sphi 0, %s68
    %s98 = sphi 0, %s100
    %s101 = sphi 0, %s98
    %s102 = sphi 0, %s101
    %s118 = sphi 0, %s102
  $region4: #{bilstm_encoder_forward.2} parent=0 // loop_header_branch
    %11 = sbr.rel (%p9) target = $region8
  $region5: #{bilstm_encoder_forward.2} parent=0 // loop_body
    %s13 = ssub.s32 %s8, 1
    %s14 = ssub.s32 %s8, 2
    %s21 = sadd.s32 1, %s16
    %p22 = scmp.ge.s32.totalorder %s21, 1
    %s23 = scalar_select %p22, 0, %s21
    %s24 = sadd.s32 1, %s15
    %s25 = scalar_select %p22, %s24, %s15
    %p26 = scmp.ge.s32.totalorder %s25, 2
    %s27 = scalar_select %p26, 0, %s25
    %p28 = scmp.eq.s32.totalorder %s15, 0
    %s29 = ssub.s32 0, %s16
    %s30 = scalar_select %p28, %s16, %s29
    %p31 = scmp.eq.s32.totalorder %s27, 0
    %s32 = ssub.s32 0, %s23
    %s33 = scalar_select %p31, %s23, %s32
    %s34 = ssub.s32 %s15, %s27
    %s35 = ssub.s32 %s30, %s33
    %s36 = sor.u32 %s34, %s35
    %p37 = scmp.eq.s32.totalorder %s36, 0
    %s39 = sadd.s32 %s38, 1
    %s40 = scalar_select %p37, %s38, %s39
    %p43 = pneg %p37
    %p44 = scmp.eq.s32.totalorder %s8, 1
    %p45 = por %p43, %p44
    %p46 = scmp.ne.s32.totalorder %s38, %s41
    %p47 = scmp.eq.s32.totalorder %s8, 0
    %p48 = por %p46, %p47
    %p49 = scmp.ne.s32.totalorder %s38, %s41
    %p50 = scmp.eq.s32.totalorder %s13, 1
    %p51 = por %p49, %p50
    %p52 = scmp.ne.s32.totalorder %s41, %s42
    %p53 = scmp.eq.s32.totalorder %s13, 0
    %p54 = por %p52, %p53
    %p55 = scmp.ne.s32.totalorder %s41, %s42
    %p56 = scmp.eq.s32.totalorder %s14, 1
    %p57 = por %p55, %p56
    %p59 = scmp.ne.s32.totalorder %s42, %s58
    %p60 = scmp.eq.s32.totalorder %s14, 0
    %p61 = por %p59, %p60
    %s62 = ssub.s32 %s15, %s27
    %p63 = scmp.eq.s32.totalorder %s62, 0
    %s65 = sadd.s32 %s64, 1
    %s66 = scalar_select %p63, %s64, %s65
    %p69 = pneg %p63
    %p70 = scmp.eq.s32.totalorder %s8, 1
    %p71 = por %p69, %p70
    %p72 = scmp.ne.s32.totalorder %s64, %s67
    %p73 = scmp.eq.s32.totalorder %s8, 0
    %p74 = por %p72, %p73
    %p75 = scmp.ne.s32.totalorder %s64, %s67
    %p76 = scmp.eq.s32.totalorder %s13, 1
    %p77 = por %p75, %p76
    %p78 = scmp.ne.s32.totalorder %s67, %s68
    %p79 = scmp.eq.s32.totalorder %s13, 0
    %p80 = por %p78, %p79
    %p81 = scmp.ne.s32.totalorder %s67, %s68
    %p82 = scmp.eq.s32.totalorder %s14, 1
    %p83 = por %p81, %p82
    %p85 = scmp.ne.s32.totalorder %s68, %s84
    %p86 = scmp.eq.s32.totalorder %s14, 0
    %p87 = por %p85, %p86
    %p88 = scmp.eq.s32.totalorder %s15, 0
    %s89 = ssub.s32 0, %s16
    %s90 = scalar_select %p88, %s16, %s89
    %p91 = scmp.eq.s32.totalorder %s27, 0
    %s92 = ssub.s32 0, %s23
    %s93 = scalar_select %p91, %s23, %s92
    %s94 = ssub.s32 %s15, %s27
    %s95 = ssub.s32 %s90, %s93
    %s96 = sor.u32 %s94, %s95
    %p97 = scmp.eq.s32.totalorder %s96, 0
    %s99 = sadd.s32 %s98, 1
    %s100 = scalar_select %p97, %s98, %s99
    %p103 = pneg %p97
    %p104 = scmp.eq.s32.totalorder %s8, 1
    %p105 = por %p103, %p104
    %p106 = scmp.ne.s32.totalorder %s98, %s101
    %p107 = scmp.eq.s32.totalorder %s8, 0
    %p108 = por %p106, %p107
    %p109 = scmp.ne.s32.totalorder %s98, %s101
    %p110 = scmp.eq.s32.totalorder %s13, 1
    %p111 = por %p109, %p110
    %p112 = scmp.ne.s32.totalorder %s101, %s102
    %p113 = scmp.eq.s32.totalorder %s13, 0
    %p114 = por %p112, %p113
    %p115 = scmp.ne.s32.totalorder %s101, %s102
    %p116 = scmp.eq.s32.totalorder %s14, 1
    %p117 = por %p115, %p116
    %p119 = scmp.ne.s32.totalorder %s102, %s118
    %p120 = scmp.eq.s32.totalorder %s14, 0
    %p121 = por %p119, %p120
    %p122 = scmp.le.s32.totalorder 1, %s8
    %p123 = scmp.lt.s32.totalorder %s8, 3
    %p124 = pnand %p122, %p123
    %p125 = pneg %p124
    // Predicated region
    $region9: #{bilstm_encoder_forward.2} parent=5 // pred_check
      _
    $region10: #{bilstm_encoder_forward.2} parent=5 // pred_check_branch
      %127 = sbr.rel (%p124) target = $region12
    $region11: #{bilstm_encoder_forward.2} parent=5 // pred_region
      %s128 = ssub.s32 %s8, 1
    $region12: #{bilstm_encoder_forward.2} parent=5 // pred_fallthru
      _
    %p129 = scmp.lt.s32.totalorder %s8, 2
    // Predicated region
    $region13: #{bilstm_encoder_forward.2} parent=5 // pred_check
      %p130 = pneg %p129
    $region14: #{bilstm_encoder_forward.2} parent=5 // pred_check_branch
      %132 = sbr.rel (%p130) target = $region16
    $region15: #{bilstm_encoder_forward.2} parent=5 // pred_region
      // Predicated region
      $region17: #{bilstm_encoder_forward.2} parent=15 // pred_check
        %p133 = pneg %p48
      $region18: #{bilstm_encoder_forward.2} parent=15 // pred_check_branch
        %135 = sbr.rel (%p133) target = $region20
      $region19: #{bilstm_encoder_forward.2} parent=15 // pred_region
        %p136 = scmp.eq.s32.totalorder %s15, 0
        %s137 = ssub.s32 0, %s16
        %s138 = scalar_select %p136, %s16, %s137
        %s139 = smul.u32 8, %s138
        %p140 = scmp.lt.s32.totalorder %s15, 1
        %s141 = scalar_select %p140, %s15, 1
        %p142 = scmp.lt.s32.totalorder %s139, 7
        %s143 = scalar_select %p142, %s139, 7
        %s144 = smul.addr %s141, 8
        %s145 = sadd.s32 %s143, %s144
        %s146 = smul.addr %s145, 8
        %s147 = scalar_lea.vmem %s0, %s146
        %p148 = scmp.eq.s32.totalorder %s15, 0
        %s149 = ssub.s32 0, %s16
        %s150 = scalar_select %p148, %s16, %s149
        %s151 = smul.u32 8, %s150
      $region20: #{bilstm_encoder_forward.2} parent=15 // pred_fallthru
        _
      // Predicated region
      $region21: #{bilstm_encoder_forward.2} parent=15 // pred_check
        %p152 = pneg %p74
      $region22: #{bilstm_encoder_forward.2} parent=15 // pred_check_branch
        %154 = sbr.rel (%p152) target = $region24
      $region23: #{bilstm_encoder_forward.2} parent=15 // pred_region
        %p155 = scmp.lt.s32.totalorder %s15, 1
        %s156 = scalar_select %p155, %s15, 1
        %s157 = smul.addr %s156, 4
        %s158 = smul.addr %s157, 8
        %s159 = scalar_lea.vmem %s1, %s158
      $region24: #{bilstm_encoder_forward.2} parent=15 // pred_fallthru
        _
    $region16: #{bilstm_encoder_forward.2} parent=5 // pred_fallthru
      _
    %p160 = scmp.le.s32.totalorder 1, %s8
    %p161 = scmp.lt.s32.totalorder %s8, 3
    %p162 = pnand %p160, %p161
    %p163 = pneg %p162
    // Predicated region
    $region25: #{bilstm_encoder_forward.2} parent=5 // pred_check
      _
    $region26: #{bilstm_encoder_forward.2} parent=5 // pred_check_branch
      %165 = sbr.rel (%p162) target = $region28
    $region27: #{bilstm_encoder_forward.2} parent=5 // pred_region
      %s166 = ssub.s32 %s8, 1
      %p167 = scmp.eq.s32.totalorder %s17, 0
      %s168 = ssub.s32 0, %s18
      %s169 = scalar_select %p167, %s18, %s168
      %s170 = smul.u32 8, %s169
      %p171 = scmp.lt.s32.totalorder %s17, 1
      %s172 = scalar_select %p171, %s17, 1
      %p173 = scmp.lt.s32.totalorder %s170, 7
      %s174 = scalar_select %p173, %s170, 7
      %s175 = smul.addr %s172, 8
      %s176 = sadd.s32 %s174, %s175
      %s177 = smul.addr %s176, 8
      %s178 = scalar_lea.vmem %s0, %s177
      %p179 = pneg %p54
      %p180 = pneg %p51
      %p181 = scmp.lt.s32.totalorder %s17, 1
      %s182 = scalar_select %p181, %s17, 1
      %s183 = smul.addr %s182, 4
      %s184 = smul.addr %s183, 8
      %s185 = scalar_lea.vmem %s1, %s184
      %p186 = pneg %p80
      %p187 = pneg %p77
      %p188 = pneg %p114
      %p189 = pneg %p111
      %p190 = scmp.eq.s32.totalorder %s17, 0
      %s191 = ssub.s32 0, %s18
      %s192 = scalar_select %p190, %s18, %s191
      %s193 = smul.u32 8, %s192
      %p194 = scmp.lt.s32.totalorder %s17, 1
      %s195 = scalar_select %p194, %s17, 1
      %p196 = scmp.lt.s32.totalorder %s193, 7
      %s197 = scalar_select %p196, %s193, 7
      %s198 = smul.addr %s195, 8
      %s199 = sadd.s32 %s197, %s198
      %s200 = smul.addr %s199, 8
      %s201 = scalar_lea.vmem %s2, %s200
      %p202 = scmp.eq.s32.totalorder %s17, 0
      %s203 = ssub.s32 0, %s18
      %s204 = scalar_select %p202, %s18, %s203
      %s205 = smul.u32 8, %s204
      %p206 = scmp.lt.s32.totalorder %s17, 1
      %s207 = scalar_select %p206, %s17, 1
      %p208 = scmp.lt.s32.totalorder %s205, 7
      %s209 = scalar_select %p208, %s205, 7
      %s210 = smul.addr %s207, 8
      %s211 = sadd.s32 %s209, %s210
      %s212 = smul.addr %s211, 8
      %s213 = scalar_lea.vmem %s0, %s212
      %p214 = scmp.eq.s32.totalorder %s17, 0
      %s215 = ssub.s32 0, %s18
      %s216 = scalar_select %p214, %s18, %s215
      %s217 = smul.u32 8, %s216
      %p218 = scmp.lt.s32.totalorder %s17, 1
      %s219 = scalar_select %p218, %s17, 1
      %s220 = smul.addr %s219, 4
      %s221 = smul.addr %s220, 8
      %s222 = scalar_lea.vmem %s1, %s221
      %p223 = scmp.eq.s32.totalorder %s17, 0
      %s224 = ssub.s32 0, %s18
      %s225 = scalar_select %p223, %s18, %s224
      %s226 = smul.u32 8, %s225
      %p227 = scmp.lt.s32.totalorder %s17, 1
      %s228 = scalar_select %p227, %s17, 1
      %p229 = scmp.lt.s32.totalorder %s226, 7
      %s230 = scalar_select %p229, %s226, 7
      %s231 = smul.addr %s228, 8
      %s232 = sadd.s32 %s230, %s231
      %s233 = smul.addr %s232, 8
      %s234 = scalar_lea.vmem %s2, %s233
      %p235 = scmp.eq.s32.totalorder %s17, 0
      %s236 = ssub.s32 0, %s18
      %s237 = scalar_select %p235, %s18, %s236
      %s238 = smul.u32 8, %s237
      %p239 = scmp.eq.s32.totalorder %s18, 0
      // Predicated region
      $region29: #{bilstm_encoder_forward.2} parent=27 // pred_check
        %p240 = pneg %p239
      $region30: #{bilstm_encoder_forward.2} parent=27 // pred_check_branch
        %242 = sbr.rel (%p240) target = $region32
      $region31: #{bilstm_encoder_forward.2} parent=27 // pred_region
        %vm243 = vcmask 261120
        %244 = vst.msk [vmem:[#allocation2] sm:$0xff] %vm243, 0.0
        %245 = vst.msk [vmem:[#allocation3] sm:$0xff] %vm243, 0.0
      $region32: #{bilstm_encoder_forward.2} parent=27 // pred_fallthru
        _
      %v246 = vld [vmem:[%s222] sm:$0xff]
      %v247 = vld [vmem:[%s222 + $0x8] sm:$0xff]
      %v248 = vld [vmem:[%s222 + $0x10] sm:$0xff]
      %v249 = vld [vmem:[%s222 + $0x18] sm:$0xff]
      %p250 = scmp.eq.s32.totalorder %s17, 0
      %s251 = scalar_select %p250, 0, 7
      %v252 = vld [vmem:[#allocation2] sm:$0xff]
      %v253 = vld [vmem:[#allocation3] sm:$0xff]
      %s254 = smul.u32 %s251, 8
      %s255 = scalar_lea.vmem %s213, %s254
      %v256 = vld [vmem:[%s255] sm:$0xff]
      %vm257 = vcmask 261120
      %v259 = vsel %vm257, %v252, 0
      %261 = vmatprep.subr.mxu0 0.0
      %262 = vmatpush1.msra.mxu0 %v246
      %263 = vmatprep.subr.mxu0 0.0
      %264 = vmatpush1.msra.mxu0 %v247
      %265 = vmatprep.subr.mxu0 0.0
      %266 = vmatpush1.msra.mxu0 %v248
      %267 = vmatprep.subr.mxu0 0.0
      %268 = vmatpush1.msra.mxu0 %v249
      %269 = vmatprep.subr.mxu0 0.0
      %270 = vmatpush1.msra.mxu0 0.0
      %271 = vmatprep.subr.mxu0 0.0
      %272 = vmatpush1.msra.mxu0 0.0
      %273 = vmatprep.subr.mxu0 0.0
      %274 = vmatpush1.msra.mxu0 0.0
      %275 = vmatprep.subr.mxu0 0.0
      %276 = vmatpush1.msra.mxu0 0.0
      %277 = vmatprep.subr.mxu0 0.0
      %278 = vmatpush1.msra.mxu0 0.0
      %279 = vmatprep.subr.mxu0 0.0
      %280 = vmatpush1.msra.mxu0 0.0
      %281 = vmatprep.subr.mxu0 0.0
      %282 = vmatpush1.msra.mxu0 0.0
      %283 = vmatprep.subr.mxu0 0.0
      %284 = vmatpush1.msra.mxu0 0.0
      %285 = vmatprep.subr.mxu0 0.0
      %286 = vmatpush1.msra.mxu0 0.0
      %287 = vmatprep.subr.mxu0 0.0
      %288 = vmatpush1.msra.mxu0 0.0
      %289 = vmatprep.subr.mxu0 0.0
      %290 = vmatpush1.msra.mxu0 0.0
      %291 = vmatprep.subr.mxu0 0.0
      %292 = vmatpush1.msra.mxu0 0.0
      %293 = vmatprep.subr.mxu0 0.0
      %294 = vmatpush1.msra.mxu0 0.0
      %295 = vmatprep.subr.mxu0 0.0
      %296 = vmatpush1.msra.mxu0 0.0
      %297 = vmatprep.subr.mxu0 0.0
      %298 = vmatpush1.msra.mxu0 0.0
      %299 = vmatprep.subr.mxu0 0.0
      %300 = vmatpush1.msra.mxu0 0.0
      %301 = vmatprep.subr.mxu0 0.0
      %302 = vmatpush1.msra.mxu0 0.0
      %303 = vmatprep.subr.mxu0 0.0
      %304 = vmatpush1.msra.mxu0 0.0
      %305 = vmatprep.subr.mxu0 0.0
      %306 = vmatpush1.msra.mxu0 0.0
      %307 = vmatprep.subr.mxu0 0.0
      %308 = vmatpush1.msra.mxu0 0.0
      %309 = vmatprep.subr.mxu0 0.0
      %310 = vmatpush1.msra.mxu0 0.0
      %311 = vmatprep.subr.mxu0 0.0
      %312 = vmatpush1.msra.mxu0 0.0
      %313 = vmatprep.subr.mxu0 0.0
      %314 = vmatpush1.msra.mxu0 0.0
      %315 = vmatprep.subr.mxu0 0.0
      %316 = vmatpush1.msra.mxu0 0.0
      %317 = vmatprep.subr.mxu0 0.0
      %318 = vmatpush1.msra.mxu0 0.0
      %319 = vmatprep.subr.mxu0 0.0
      %320 = vmatpush1.msra.mxu0 0.0
      %321 = vmatprep.subr.mxu0 0.0
      %322 = vmatpush1.msra.mxu0 0.0
      %323 = vmatprep.subr.mxu0 0.0
      %324 = vmatpush1.msra.mxu0 0.0
      %325 = vmatprep.mubr.f32.mxu0 0.0
      %326 = vmatmul.mubr.f32.gmra.mrb[0].mxu0 %v259
      %v327 = vpop.f32.mrb[0].mxu0
      %v328 = vadd.f32 0.0, %v327
      %v329 = vpop.f32.mrb[0].mxu0
      %330 = vdwg.mxu0
      %v331 = vadd.f32 %v256, %v328
      %v332 = vxor.u32 %v331, 2147483648
      %v333 = vmul.f32 %v332, 1.442695
      %v334 = vpow.pop %v333
      %v335 = vadd.f32 %v334, 1.0
      %v336 = vrcp.pop %v335
      %v337 = vmul.f32 1.0, %v336
      %v338 = vtanh.pop %v331
      %340 = vrot.lane.b32.xlu0 %v253, 32
      %v341 = vpop.permute.xlu0 %340
      %v343 = vmul.f32 %v337, %v341
      %345 = vrot.lane.b32.xlu0 %v338, 64
      %v346 = vpop.permute.xlu0 %345
      %v348 = vmul.f32 %v337, %v346
      %350 = vrot.lane.b32.xlu0 %v348, 32
      %v351 = vpop.permute.xlu0 %350
      %v353 = vadd.f32 %v343, %v351
      %v354 = vtanh.pop %v353
      %356 = vrot.lane.b32.xlu0 %v354, 64
      %v357 = vpop.permute.xlu0 %356
      %v359 = vmul.f32 %v337, %v357
      %361 = vrot.lane.b32.xlu0 %v353, 96
      %v362 = vpop.permute.xlu0 %361
      %364 = vst.msk [vmem:[#allocation3] sm:$0xff] %vm257, %v362
      %366 = vrot.lane.b32.xlu0 %v359, 32
      %v367 = vpop.permute.xlu0 %366
      %369 = vst.msk [vmem:[#allocation2] sm:$0xff] %vm257, %v367
      %s370 = scalar_lea.vmem %s234, %s254
      %371 = vst.msk [vmem:[%s370] sm:$0xff] %vm257, %v367
      %s372 = scalar_select %p250, 1, 6
      %v373 = vld [vmem:[#allocation2] sm:$0xff]
      %v374 = vld [vmem:[#allocation3] sm:$0xff]
      %s375 = smul.u32 %s372, 8
      %s376 = scalar_lea.vmem %s213, %s375
      %v377 = vld [vmem:[%s376] sm:$0xff]
      %v379 = vsel %vm257, %v373, 0
      %381 = vmatprep.subr.mxu0 0.0
      %382 = vmatpush1.msra.mxu0 %v246
      %383 = vmatprep.subr.mxu0 0.0
      %384 = vmatpush1.msra.mxu0 %v247
      %385 = vmatprep.subr.mxu0 0.0
      %386 = vmatpush1.msra.mxu0 %v248
      %387 = vmatprep.subr.mxu0 0.0
      %388 = vmatpush1.msra.mxu0 %v249
      %389 = vmatprep.subr.mxu0 0.0
      %390 = vmatpush1.msra.mxu0 0.0
      %391 = vmatprep.subr.mxu0 0.0
      %392 = vmatpush1.msra.mxu0 0.0
      %393 = vmatprep.subr.mxu0 0.0
      %394 = vmatpush1.msra.mxu0 0.0
      %395 = vmatprep.subr.mxu0 0.0
      %396 = vmatpush1.msra.mxu0 0.0
      %397 = vmatprep.subr.mxu0 0.0
      %398 = vmatpush1.msra.mxu0 0.0
      %399 = vmatprep.subr.mxu0 0.0
      %400 = vmatpush1.msra.mxu0 0.0
      %401 = vmatprep.subr.mxu0 0.0
      %402 = vmatpush1.msra.mxu0 0.0
      %403 = vmatprep.subr.mxu0 0.0
      %404 = vmatpush1.msra.mxu0 0.0
      %405 = vmatprep.subr.mxu0 0.0
      %406 = vmatpush1.msra.mxu0 0.0
      %407 = vmatprep.subr.mxu0 0.0
      %408 = vmatpush1.msra.mxu0 0.0
      %409 = vmatprep.subr.mxu0 0.0
      %410 = vmatpush1.msra.mxu0 0.0
      %411 = vmatprep.subr.mxu0 0.0
      %412 = vmatpush1.msra.mxu0 0.0
      %413 = vmatprep.subr.mxu0 0.0
      %414 = vmatpush1.msra.mxu0 0.0
      %415 = vmatprep.subr.mxu0 0.0
      %416 = vmatpush1.msra.mxu0 0.0
      %417 = vmatprep.subr.mxu0 0.0
      %418 = vmatpush1.msra.mxu0 0.0
      %419 = vmatprep.subr.mxu0 0.0
      %420 = vmatpush1.msra.mxu0 0.0
      %421 = vmatprep.subr.mxu0 0.0
      %422 = vmatpush1.msra.mxu0 0.0
      %423 = vmatprep.subr.mxu0 0.0
      %424 = vmatpush1.msra.mxu0 0.0
      %425 = vmatprep.subr.mxu0 0.0
      %426 = vmatpush1.msra.mxu0 0.0
      %427 = vmatprep.subr.mxu0 0.0
      %428 = vmatpush1.msra.mxu0 0.0
      %429 = vmatprep.subr.mxu0 0.0
      %430 = vmatpush1.msra.mxu0 0.0
      %431 = vmatprep.subr.mxu0 0.0
      %432 = vmatpush1.msra.mxu0 0.0
      %433 = vmatprep.subr.mxu0 0.0
      %434 = vmatpush1.msra.mxu0 0.0
      %435 = vmatprep.subr.mxu0 0.0
      %436 = vmatpush1.msra.mxu0 0.0
      %437 = vmatprep.subr.mxu0 0.0
      %438 = vmatpush1.msra.mxu0 0.0
      %439 = vmatprep.subr.mxu0 0.0
      %440 = vmatpush1.msra.mxu0 0.0
      %441 = vmatprep.subr.mxu0 0.0
      %442 = vmatpush1.msra.mxu0 0.0
      %443 = vmatprep.subr.mxu0 0.0
      %444 = vmatpush1.msra.mxu0 0.0
      %445 = vmatprep.mubr.f32.mxu0 0.0
      %446 = vmatmul.mubr.f32.gmra.mrb[0].mxu0 %v379
      %v447 = vpop.f32.mrb[0].mxu0
      %v448 = vadd.f32 0.0, %v447
      %v449 = vpop.f32.mrb[0].mxu0
      %450 = vdwg.mxu0
      %v451 = vadd.f32 %v377, %v448
      %v452 = vxor.u32 %v451, 2147483648
      %v453 = vmul.f32 %v452, 1.442695
      %v454 = vpow.pop %v453
      %v455 = vadd.f32 %v454, 1.0
      %v456 = vrcp.pop %v455
      %v457 = vmul.f32 1.0, %v456
      %v458 = vtanh.pop %v451
      %460 = vrot.lane.b32.xlu0 %v374, 32
      %v461 = vpop.permute.xlu0 %460
      %v463 = vmul.f32 %v457, %v461
      %465 = vrot.lane.b32.xlu0 %v458, 64
      %v466 = vpop.permute.xlu0 %465
      %v468 = vmul.f32 %v457, %v466
      %470 = vrot.lane.b32.xlu0 %v468, 32
      %v471 = vpop.permute.xlu0 %470
      %v473 = vadd.f32 %v463, %v471
      %v474 = vtanh.pop %v473
      %476 = vrot.lane.b32.xlu0 %v474, 64
      %v477 = vpop.permute.xlu0 %476
      %v479 = vmul.f32 %v457, %v477
      %481 = vrot.lane.b32.xlu0 %v473, 96
      %v482 = vpop.permute.xlu0 %481
      %484 = vst.msk [vmem:[#allocation3] sm:$0xff] %vm257, %v482
      %486 = vrot.lane.b32.xlu0 %v479, 32
      %v487 = vpop.permute.xlu0 %486
      %489 = vst.msk [vmem:[#allocation2] sm:$0xff] %vm257, %v487
      %s490 = scalar_lea.vmem %s234, %s375
      %491 = vst.msk [vmem:[%s490] sm:$0xff] %vm257, %v487
      %s492 = scalar_select %p250, 2, 5
      %v493 = vld [vmem:[#allocation2] sm:$0xff]
      %v494 = vld [vmem:[#allocation3] sm:$0xff]
      %s495 = smul.u32 %s492, 8
      %s496 = scalar_lea.vmem %s213, %s495
      %v497 = vld [vmem:[%s496] sm:$0xff]
      %v499 = vsel %vm257, %v493, 0
      %501 = vmatprep.subr.mxu0 0.0
      %502 = vmatpush1.msra.mxu0 %v246
      %503 = vmatprep.subr.mxu0 0.0
      %504 = vmatpush1.msra.mxu0 %v247
      %505 = vmatprep.subr.mxu0 0.0
      %506 = vmatpush1.msra.mxu0 %v248
      %507 = vmatprep.subr.mxu0 0.0
      %508 = vmatpush1.msra.mxu0 %v249
      %509 = vmatprep.subr.mxu0 0.0
      %510 = vmatpush1.msra.mxu0 0.0
      %511 = vmatprep.subr.mxu0 0.0
      %512 = vmatpush1.msra.mxu0 0.0
      %513 = vmatprep.subr.mxu0 0.0
      %514 = vmatpush1.msra.mxu0 0.0
      %515 = vmatprep.subr.mxu0 0.0
      %516 = vmatpush1.msra.mxu0 0.0
      %517 = vmatprep.subr.mxu0 0.0
      %518 = vmatpush1.msra.mxu0 0.0
      %519 = vmatprep.subr.mxu0 0.0
      %520 = vmatpush1.msra.mxu0 0.0
      %521 = vmatprep.subr.mxu0 0.0
      %522 = vmatpush1.msra.mxu0 0.0
      %523 = vmatprep.subr.mxu0 0.0
      %524 = vmatpush1.msra.mxu0 0.0
      %525 = vmatprep.subr.mxu0 0.0
      %526 = vmatpush1.msra.mxu0 0.0
      %527 = vmatprep.subr.mxu0 0.0
      %528 = vmatpush1.msra.mxu0 0.0
      %529 = vmatprep.subr.mxu0 0.0
      %530 = vmatpush1.msra.mxu0 0.0
      %531 = vmatprep.subr.mxu0 0.0
      %532 = vmatpush1.msra.mxu0 0.0
      %533 = vmatprep.subr.mxu0 0.0
      %534 = vmatpush1.msra.mxu0 0.0
      %535 = vmatprep.subr.mxu0 0.0
      %536 = vmatpush1.msra.mxu0 0.0
      %537 = vmatprep.subr.mxu0 0.0
      %538 = vmatpush1.msra.mxu0 0.0
      %539 = vmatprep.subr.mxu0 0.0
      %540 = vmatpush1.msra.mxu0 0.0
      %541 = vmatprep.subr.mxu0 0.0
      %542 = vmatpush1.msra.mxu0 0.0
      %543 = vmatprep.subr.mxu0 0.0
      %544 = vmatpush1.msra.mxu0 0.0
      %545 = vmatprep.subr.mxu0 0.0
      %546 = vmatpush1.msra.mxu0 0.0
      %547 = vmatprep.subr.mxu0 0.0
      %548 = vmatpush1.msra.mxu0 0.0
      %549 = vmatprep.subr.mxu0 0.0
      %550 = vmatpush1.msra.mxu0 0.0
      %551 = vmatprep.subr.mxu0 0.0
      %552 = vmatpush1.msra.mxu0 0.0
      %553 = vmatprep.subr.mxu0 0.0
      %554 = vmatpush1.msra.mxu0 0.0
      %555 = vmatprep.subr.mxu0 0.0
      %556 = vmatpush1.msra.mxu0 0.0
      %557 = vmatprep.subr.mxu0 0.0
      %558 = vmatpush1.msra.mxu0 0.0
      %559 = vmatprep.subr.mxu0 0.0
      %560 = vmatpush1.msra.mxu0 0.0
      %561 = vmatprep.subr.mxu0 0.0
      %562 = vmatpush1.msra.mxu0 0.0
      %563 = vmatprep.subr.mxu0 0.0
      %564 = vmatpush1.msra.mxu0 0.0
      %565 = vmatprep.mubr.f32.mxu0 0.0
      %566 = vmatmul.mubr.f32.gmra.mrb[0].mxu0 %v499
      %v567 = vpop.f32.mrb[0].mxu0
      %v568 = vadd.f32 0.0, %v567
      %v569 = vpop.f32.mrb[0].mxu0
      %570 = vdwg.mxu0
      %v571 = vadd.f32 %v497, %v568
      %v572 = vxor.u32 %v571, 2147483648
      %v573 = vmul.f32 %v572, 1.442695
      %v574 = vpow.pop %v573
      %v575 = vadd.f32 %v574, 1.0
      %v576 = vrcp.pop %v575
      %v577 = vmul.f32 1.0, %v576
      %v578 = vtanh.pop %v571
      %580 = vrot.lane.b32.xlu0 %v494, 32
      %v581 = vpop.permute.xlu0 %580
      %v583 = vmul.f32 %v577, %v581
      %585 = vrot.lane.b32.xlu0 %v578, 64
      %v586 = vpop.permute.xlu0 %585
      %v588 = vmul.f32 %v577, %v586
      %590 = vrot.lane.b32.xlu0 %v588, 32
      %v591 = vpop.permute.xlu0 %590
      %v593 = vadd.f32 %v583, %v591
      %v594 = vtanh.pop %v593
      %596 = vrot.lane.b32.xlu0 %v594, 64
      %v597 = vpop.permute.xlu0 %596
      %v599 = vmul.f32 %v577, %v597
      %601 = vrot.lane.b32.xlu0 %v593, 96
      %v602 = vpop.permute.xlu0 %601
      %604 = vst.msk [vmem:[#allocation3] sm:$0xff] %vm257, %v602
      %606 = vrot.lane.b32.xlu0 %v599, 32
      %v607 = vpop.permute.xlu0 %606
      %609 = vst.msk [vmem:[#allocation2] sm:$0xff] %vm257, %v607
      %s610 = scalar_lea.vmem %s234, %s495
      %611 = vst.msk [vmem:[%s610] sm:$0xff] %vm257, %v607
      %s612 = scalar_select %p250, 3, 4
      %v613 = vld [vmem:[#allocation2] sm:$0xff]
      %v614 = vld [vmem:[#allocation3] sm:$0xff]
      %s615 = smul.u32 %s612, 8
      %s616 = scalar_lea.vmem %s213, %s615
      %v617 = vld [vmem:[%s616] sm:$0xff]
      %v619 = vsel %vm257, %v613, 0
      %621 = vmatprep.subr.mxu0 0.0
      %622 = vmatpush1.msra.mxu0 %v246
      %623 = vmatprep.subr.mxu0 0.0
      %624 = vmatpush1.msra.mxu0 %v247
      %625 = vmatprep.subr.mxu0 0.0
      %626 = vmatpush1.msra.mxu0 %v248
      %627 = vmatprep.subr.mxu0 0.0
      %628 = vmatpush1.msra.mxu0 %v249
      %629 = vmatprep.subr.mxu0 0.0
      %630 = vmatpush1.msra.mxu0 0.0
      %631 = vmatprep.subr.mxu0 0.0
      %632 = vmatpush1.msra.mxu0 0.0
      %633 = vmatprep.subr.mxu0 0.0
      %634 = vmatpush1.msra.mxu0 0.0
      %635 = vmatprep.subr.mxu0 0.0
      %636 = vmatpush1.msra.mxu0 0.0
      %637 = vmatprep.subr.mxu0 0.0
      %638 = vmatpush1.msra.mxu0 0.0
      %639 = vmatprep.subr.mxu0 0.0
      %640 = vmatpush1.msra.mxu0 0.0
      %641 = vmatprep.subr.mxu0 0.0
      %642 = vmatpush1.msra.mxu0 0.0
      %643 = vmatprep.subr.mxu0 0.0
      %644 = vmatpush1.msra.mxu0 0.0
      %645 = vmatprep.subr.mxu0 0.0
      %646 = vmatpush1.msra.mxu0 0.0
      %647 = vmatprep.subr.mxu0 0.0
      %648 = vmatpush1.msra.mxu0 0.0
      %649 = vmatprep.subr.mxu0 0.0
      %650 = vmatpush1.msra.mxu0 0.0
      %651 = vmatprep.subr.mxu0 0.0
      %652 = vmatpush1.msra.mxu0 0.0
      %653 = vmatprep.subr.mxu0 0.0
      %654 = vmatpush1.msra.mxu0 0.0
      %655 = vmatprep.subr.mxu0 0.0
      %656 = vmatpush1.msra.mxu0 0.0
      %657 = vmatprep.subr.mxu0 0.0
      %658 = vmatpush1.msra.mxu0 0.0
      %659 = vmatprep.subr.mxu0 0.0
      %660 = vmatpush1.msra.mxu0 0.0
      %661 = vmatprep.subr.mxu0 0.0
      %662 = vmatpush1.msra.mxu0 0.0
      %663 = vmatprep.subr.mxu0 0.0
      %664 = vmatpush1.msra.mxu0 0.0
      %665 = vmatprep.subr.mxu0 0.0
      %666 = vmatpush1.msra.mxu0 0.0
      %667 = vmatprep.subr.mxu0 0.0
      %668 = vmatpush1.msra.mxu0 0.0
      %669 = vmatprep.subr.mxu0 0.0
      %670 = vmatpush1.msra.mxu0 0.0
      %671 = vmatprep.subr.mxu0 0.0
      %672 = vmatpush1.msra.mxu0 0.0
      %673 = vmatprep.subr.mxu0 0.0
      %674 = vmatpush1.msra.mxu0 0.0
      %675 = vmatprep.subr.mxu0 0.0
      %676 = vmatpush1.msra.mxu0 0.0
      %677 = vmatprep.subr.mxu0 0.0
      %678 = vmatpush1.msra.mxu0 0.0
      %679 = vmatprep.subr.mxu0 0.0
      %680 = vmatpush1.msra.mxu0 0.0
      %681 = vmatprep.subr.mxu0 0.0
      %682 = vmatpush1.msra.mxu0 0.0
      %683 = vmatprep.subr.mxu0 0.0
      %684 = vmatpush1.msra.mxu0 0.0
      %685 = vmatprep.mubr.f32.mxu0 0.0
      %686 = vmatmul.mubr.f32.gmra.mrb[0].mxu0 %v619
      %v687 = vpop.f32.mrb[0].mxu0
      %v688 = vadd.f32 0.0, %v687
      %v689 = vpop.f32.mrb[0].mxu0
      %690 = vdwg.mxu0
      %v691 = vadd.f32 %v617, %v688
      %v692 = vxor.u32 %v691, 2147483648
      %v693 = vmul.f32 %v692, 1.442695
      %v694 = vpow.pop %v693
      %v695 = vadd.f32 %v694, 1.0
      %v696 = vrcp.pop %v695
      %v697 = vmul.f32 1.0, %v696
      %v698 = vtanh.pop %v691
      %700 = vrot.lane.b32.xlu0 %v614, 32
      %v701 = vpop.permute.xlu0 %700
      %v703 = vmul.f32 %v697, %v701
      %705 = vrot.lane.b32.xlu0 %v698, 64
      %v706 = vpop.permute.xlu0 %705
      %v708 = vmul.f32 %v697, %v706
      %710 = vrot.lane.b32.xlu0 %v708, 32
      %v711 = vpop.permute.xlu0 %710
      %v713 = vadd.f32 %v703, %v711
      %v714 = vtanh.pop %v713
      %716 = vrot.lane.b32.xlu0 %v714, 64
      %v717 = vpop.permute.xlu0 %716
      %v719 = vmul.f32 %v697, %v717
      %721 = vrot.lane.b32.xlu0 %v713, 96
      %v722 = vpop.permute.xlu0 %721
      %724 = vst.msk [vmem:[#allocation3] sm:$0xff] %vm257, %v722
      %726 = vrot.lane.b32.xlu0 %v719, 32
      %v727 = vpop.permute.xlu0 %726
      %729 = vst.msk [vmem:[#allocation2] sm:$0xff] %vm257, %v727
      %s730 = scalar_lea.vmem %s234, %s615
      %731 = vst.msk [vmem:[%s730] sm:$0xff] %vm257, %v727
      %s732 = scalar_select %p250, 4, 3
      %v733 = vld [vmem:[#allocation2] sm:$0xff]
      %v734 = vld [vmem:[#allocation3] sm:$0xff]
      %s735 = smul.u32 %s732, 8
      %s736 = scalar_lea.vmem %s213, %s735
      %v737 = vld [vmem:[%s736] sm:$0xff]
      %v739 = vsel %vm257, %v733, 0
      %741 = vmatprep.subr.mxu0 0.0
      %742 = vmatpush1.msra.mxu0 %v246
      %743 = vmatprep.subr.mxu0 0.0
      %744 = vmatpush1.msra.mxu0 %v247
      %745 = vmatprep.subr.mxu0 0.0
      %746 = vmatpush1.msra.mxu0 %v248
      %747 = vmatprep.subr.mxu0 0.0
      %748 = vmatpush1.msra.mxu0 %v249
      %749 = vmatprep.subr.mxu0 0.0
      %750 = vmatpush1.msra.mxu0 0.0
      %751 = vmatprep.subr.mxu0 0.0
      %752 = vmatpush1.msra.mxu0 0.0
      %753 = vmatprep.subr.mxu0 0.0
      %754 = vmatpush1.msra.mxu0 0.0
      %755 = vmatprep.subr.mxu0 0.0
      %756 = vmatpush1.msra.mxu0 0.0
      %757 = vmatprep.subr.mxu0 0.0
      %758 = vmatpush1.msra.mxu0 0.0
      %759 = vmatprep.subr.mxu0 0.0
      %760 = vmatpush1.msra.mxu0 0.0
      %761 = vmatprep.subr.mxu0 0.0
      %762 = vmatpush1.msra.mxu0 0.0
      %763 = vmatprep.subr.mxu0 0.0
      %764 = vmatpush1.msra.mxu0 0.0
      %765 = vmatprep.subr.mxu0 0.0
      %766 = vmatpush1.msra.mxu0 0.0
      %767 = vmatprep.subr.mxu0 0.0
      %768 = vmatpush1.msra.mxu0 0.0
      %769 = vmatprep.subr.mxu0 0.0
      %770 = vmatpush1.msra.mxu0 0.0
      %771 = vmatprep.subr.mxu0 0.0
      %772 = vmatpush1.msra.mxu0 0.0
      %773 = vmatprep.subr.mxu0 0.0
      %774 = vmatpush1.msra.mxu0 0.0
      %775 = vmatprep.subr.mxu0 0.0
      %776 = vmatpush1.msra.mxu0 0.0
      %777 = vmatprep.subr.mxu0 0.0
      %778 = vmatpush1.msra.mxu0 0.0
      %779 = vmatprep.subr.mxu0 0.0
      %780 = vmatpush1.msra.mxu0 0.0
      %781 = vmatprep.subr.mxu0 0.0
      %782 = vmatpush1.msra.mxu0 0.0
      %783 = vmatprep.subr.mxu0 0.0
      %784 = vmatpush1.msra.mxu0 0.0
      %785 = vmatprep.subr.mxu0 0.0
      %786 = vmatpush1.msra.mxu0 0.0
      %787 = vmatprep.subr.mxu0 0.0
      %788 = vmatpush1.msra.mxu0 0.0
      %789 = vmatprep.subr.mxu0 0.0
      %790 = vmatpush1.msra.mxu0 0.0
      %791 = vmatprep.subr.mxu0 0.0
      %792 = vmatpush1.msra.mxu0 0.0
      %793 = vmatprep.subr.mxu0 0.0
      %794 = vmatpush1.msra.mxu0 0.0
      %795 = vmatprep.subr.mxu0 0.0
      %796 = vmatpush1.msra.mxu0 0.0
      %797 = vmatprep.subr.mxu0 0.0
      %798 = vmatpush1.msra.mxu0 0.0
      %799 = vmatprep.subr.mxu0 0.0
      %800 = vmatpush1.msra.mxu0 0.0
      %801 = vmatprep.subr.mxu0 0.0
      %802 = vmatpush1.msra.mxu0 0.0
      %803 = vmatprep.subr.mxu0 0.0
      %804 = vmatpush1.msra.mxu0 0.0
      %805 = vmatprep.mubr.f32.mxu0 0.0
      %806 = vmatmul.mubr.f32.gmra.mrb[0].mxu0 %v739
      %v807 = vpop.f32.mrb[0].mxu0
      %v808 = vadd.f32 0.0, %v807
      %v809 = vpop.f32.mrb[0].mxu0
      %810 = vdwg.mxu0
      %v811 = vadd.f32 %v737, %v808
      %v812 = vxor.u32 %v811, 2147483648
      %v813 = vmul.f32 %v812, 1.442695
      %v814 = vpow.pop %v813
      %v815 = vadd.f32 %v814, 1.0
      %v816 = vrcp.pop %v815
      %v817 = vmul.f32 1.0, %v816
      %v818 = vtanh.pop %v811
      %820 = vrot.lane.b32.xlu0 %v734, 32
      %v821 = vpop.permute.xlu0 %820
      %v823 = vmul.f32 %v817, %v821
      %825 = vrot.lane.b32.xlu0 %v818, 64
      %v826 = vpop.permute.xlu0 %825
      %v828 = vmul.f32 %v817, %v826
      %830 = vrot.lane.b32.xlu0 %v828, 32
      %v831 = vpop.permute.xlu0 %830
      %v833 = vadd.f32 %v823, %v831
      %v834 = vtanh.pop %v833
      %836 = vrot.lane.b32.xlu0 %v834, 64
      %v837 = vpop.permute.xlu0 %836
      %v839 = vmul.f32 %v817, %v837
      %841 = vrot.lane.b32.xlu0 %v833, 96
      %v842 = vpop.permute.xlu0 %841
      %844 = vst.msk [vmem:[#allocation3] sm:$0xff] %vm257, %v842
      %846 = vrot.lane.b32.xlu0 %v839, 32
      %v847 = vpop.permute.xlu0 %846
      %849 = vst.msk [vmem:[#allocation2] sm:$0xff] %vm257, %v847
      %s850 = scalar_lea.vmem %s234, %s735
      %851 = vst.msk [vmem:[%s850] sm:$0xff] %vm257, %v847
      %s852 = scalar_select %p250, 5, 2
      %v853 = vld [vmem:[#allocation2] sm:$0xff]
      %v854 = vld [vmem:[#allocation3] sm:$0xff]
      %s855 = smul.u32 %s852, 8
      %s856 = scalar_lea.vmem %s213, %s855
      %v857 = vld [vmem:[%s856] sm:$0xff]
      %v859 = vsel %vm257, %v853, 0
      %861 = vmatprep.subr.mxu0 0.0
      %862 = vmatpush1.msra.mxu0 %v246
      %863 = vmatprep.subr.mxu0 0.0
      %864 = vmatpush1.msra.mxu0 %v247
      %865 = vmatprep.subr.mxu0 0.0
      %866 = vmatpush1.msra.mxu0 %v248
      %867 = vmatprep.subr.mxu0 0.0
      %868 = vmatpush1.msra.mxu0 %v249
      %869 = vmatprep.subr.mxu0 0.0
      %870 = vmatpush1.msra.mxu0 0.0
      %871 = vmatprep.subr.mxu0 0.0
      %872 = vmatpush1.msra.mxu0 0.0
      %873 = vmatprep.subr.mxu0 0.0
      %874 = vmatpush1.msra.mxu0 0.0
      %875 = vmatprep.subr.mxu0 0.0
      %876 = vmatpush1.msra.mxu0 0.0
      %877 = vmatprep.subr.mxu0 0.0
      %878 = vmatpush1.msra.mxu0 0.0
      %879 = vmatprep.subr.mxu0 0.0
      %880 = vmatpush1.msra.mxu0 0.0
      %881 = vmatprep.subr.mxu0 0.0
      %882 = vmatpush1.msra.mxu0 0.0
      %883 = vmatprep.subr.mxu0 0.0
      %884 = vmatpush1.msra.mxu0 0.0
      %885 = vmatprep.subr.mxu0 0.0
      %886 = vmatpush1.msra.mxu0 0.0
      %887 = vmatprep.subr.mxu0 0.0
      %888 = vmatpush1.msra.mxu0 0.0
      %889 = vmatprep.subr.mxu0 0.0
      %890 = vmatpush1.msra.mxu0 0.0
      %891 = vmatprep.subr.mxu0 0.0
      %892 = vmatpush1.msra.mxu0 0.0
      %893 = vmatprep.subr.mxu0 0.0
      %894 = vmatpush1.msra.mxu0 0.0
      %895 = vmatprep.subr.mxu0 0.0
      %896 = vmatpush1.msra.mxu0 0.0
      %897 = vmatprep.subr.mxu0 0.0
      %898 = vmatpush1.msra.mxu0 0.0
      %899 = vmatprep.subr.mxu0 0.0
      %900 = vmatpush1.msra.mxu0 0.0
      %901 = vmatprep.subr.mxu0 0.0
      %902 = vmatpush1.msra.mxu0 0.0
      %903 = vmatprep.subr.mxu0 0.0
      %904 = vmatpush1.msra.mxu0 0.0
      %905 = vmatprep.subr.mxu0 0.0
      %906 = vmatpush1.msra.mxu0 0.0
      %907 = vmatprep.subr.mxu0 0.0
      %908 = vmatpush1.msra.mxu0 0.0
      %909 = vmatprep.subr.mxu0 0.0
      %910 = vmatpush1.msra.mxu0 0.0
      %911 = vmatprep.subr.mxu0 0.0
      %912 = vmatpush1.msra.mxu0 0.0
      %913 = vmatprep.subr.mxu0 0.0
      %914 = vmatpush1.msra.mxu0 0.0
      %915 = vmatprep.subr.mxu0 0.0
      %916 = vmatpush1.msra.mxu0 0.0
      %917 = vmatprep.subr.mxu0 0.0
      %918 = vmatpush1.msra.mxu0 0.0
      %919 = vmatprep.subr.mxu0 0.0
      %920 = vmatpush1.msra.mxu0 0.0
      %921 = vmatprep.subr.mxu0 0.0
      %922 = vmatpush1.msra.mxu0 0.0
      %923 = vmatprep.subr.mxu0 0.0
      %924 = vmatpush1.msra.mxu0 0.0
      %925 = vmatprep.mubr.f32.mxu0 0.0
      %926 = vmatmul.mubr.f32.gmra.mrb[0].mxu0 %v859
      %v927 = vpop.f32.mrb[0].mxu0
      %v928 = vadd.f32 0.0, %v927
      %v929 = vpop.f32.mrb[0].mxu0
      %930 = vdwg.mxu0
      %v931 = vadd.f32 %v857, %v928
      %v932 = vxor.u32 %v931, 2147483648
      %v933 = vmul.f32 %v932, 1.442695
      %v934 = vpow.pop %v933
      %v935 = vadd.f32 %v934, 1.0
      %v936 = vrcp.pop %v935
      %v937 = vmul.f32 1.0, %v936
      %v938 = vtanh.pop %v931
      %940 = vrot.lane.b32.xlu0 %v854, 32
      %v941 = vpop.permute.xlu0 %940
      %v943 = vmul.f32 %v937, %v941
      %945 = vrot.lane.b32.xlu0 %v938, 64
      %v946 = vpop.permute.xlu0 %945
      %v948 = vmul.f32 %v937, %v946
      %950 = vrot.lane.b32.xlu0 %v948, 32
      %v951 = vpop.permute.xlu0 %950
      %v953 = vadd.f32 %v943, %v951
      %v954 = vtanh.pop %v953
      %956 = vrot.lane.b32.xlu0 %v954, 64
      %v957 = vpop.permute.xlu0 %956
      %v959 = vmul.f32 %v937, %v957
      %961 = vrot.lane.b32.xlu0 %v953, 96
      %v962 = vpop.permute.xlu0 %961
      %964 = vst.msk [vmem:[#allocation3] sm:$0xff] %vm257, %v962
      %966 = vrot.lane.b32.xlu0 %v959, 32
      %v967 = vpop.permute.xlu0 %966
      %969 = vst.msk [vmem:[#allocation2] sm:$0xff] %vm257, %v967
      %s970 = scalar_lea.vmem %s234, %s855
      %971 = vst.msk [vmem:[%s970] sm:$0xff] %vm257, %v967
      %s972 = scalar_select %p250, 6, 1
      %v973 = vld [vmem:[#allocation2] sm:$0xff]
      %v974 = vld [vmem:[#allocation3] sm:$0xff]
      %s975 = smul.u32 %s972, 8
      %s976 = scalar_lea.vmem %s213, %s975
      %v977 = vld [vmem:[%s976] sm:$0xff]
      %v979 = vsel %vm257, %v973, 0
      %981 = vmatprep.subr.mxu0 0.0
      %982 = vmatpush1.msra.mxu0 %v246
      %983 = vmatprep.subr.mxu0 0.0
      %984 = vmatpush1.msra.mxu0 %v247
      %985 = vmatprep.subr.mxu0 0.0
      %986 = vmatpush1.msra.mxu0 %v248
      %987 = vmatprep.subr.mxu0 0.0
      %988 = vmatpush1.msra.mxu0 %v249
      %989 = vmatprep.subr.mxu0 0.0
      %990 = vmatpush1.msra.mxu0 0.0
      %991 = vmatprep.subr.mxu0 0.0
      %992 = vmatpush1.msra.mxu0 0.0
      %993 = vmatprep.subr.mxu0 0.0
      %994 = vmatpush1.msra.mxu0 0.0
      %995 = vmatprep.subr.mxu0 0.0
      %996 = vmatpush1.msra.mxu0 0.0
      %997 = vmatprep.subr.mxu0 0.0
      %998 = vmatpush1.msra.mxu0 0.0
      %999 = vmatprep.subr.mxu0 0.0
      %1000 = vmatpush1.msra.mxu0 0.0
      %1001 = vmatprep.subr.mxu0 0.0
      %1002 = vmatpush1.msra.mxu0 0.0
      %1003 = vmatprep.subr.mxu0 0.0
      %1004 = vmatpush1.msra.mxu0 0.0
      %1005 = vmatprep.subr.mxu0 0.0
      %1006 = vmatpush1.msra.mxu0 0.0
      %1007 = vmatprep.subr.mxu0 0.0
      %1008 = vmatpush1.msra.mxu0 0.0
      %1009 = vmatprep.subr.mxu0 0.0
      %1010 = vmatpush1.msra.mxu0 0.0
      %1011 = vmatprep.subr.mxu0 0.0
      %1012 = vmatpush1.msra.mxu0 0.0
      %1013 = vmatprep.subr.mxu0 0.0
      %1014 = vmatpush1.msra.mxu0 0.0
      %1015 = vmatprep.subr.mxu0 0.0
      %1016 = vmatpush1.msra.mxu0 0.0
      %1017 = vmatprep.subr.mxu0 0.0
      %1018 = vmatpush1.msra.mxu0 0.0
      %1019 = vmatprep.subr.mxu0 0.0
      %1020 = vmatpush1.msra.mxu0 0.0
      %1021 = vmatprep.subr.mxu0 0.0
      %1022 = vmatpush1.msra.mxu0 0.0
      %1023 = vmatprep.subr.mxu0 0.0
      %1024 = vmatpush1.msra.mxu0 0.0
      %1025 = vmatprep.subr.mxu0 0.0
      %1026 = vmatpush1.msra.mxu0 0.0
      %1027 = vmatprep.subr.mxu0 0.0
      %1028 = vmatpush1.msra.mxu0 0.0
      %1029 = vmatprep.subr.mxu0 0.0
      %1030 = vmatpush1.msra.mxu0 0.0
      %1031 = vmatprep.subr.mxu0 0.0
      %1032 = vmatpush1.msra.mxu0 0.0
      %1033 = vmatprep.subr.mxu0 0.0
      %1034 = vmatpush1.msra.mxu0 0.0
      %1035 = vmatprep.subr.mxu0 0.0
      %1036 = vmatpush1.msra.mxu0 0.0
      %1037 = vmatprep.subr.mxu0 0.0
      %1038 = vmatpush1.msra.mxu0 0.0
      %1039 = vmatprep.subr.mxu0 0.0
      %1040 = vmatpush1.msra.mxu0 0.0
      %1041 = vmatprep.subr.mxu0 0.0
      %1042 = vmatpush1.msra.mxu0 0.0
      %1043 = vmatprep.subr.mxu0 0.0
      %1044 = vmatpush1.msra.mxu0 0.0
      %1045 = vmatprep.mubr.f32.mxu0 0.0
      %1046 = vmatmul.mubr.f32.gmra.mrb[0].mxu0 %v979
      %v1047 = vpop.f32.mrb[0].mxu0
      %v1048 = vadd.f32 0.0, %v1047
      %v1049 = vpop.f32.mrb[0].mxu0
      %1050 = vdwg.mxu0
      %v1051 = vadd.f32 %v977, %v1048
      %v1052 = vxor.u32 %v1051, 2147483648
      %v1053 = vmul.f32 %v1052, 1.442695
      %v1054 = vpow.pop %v1053
      %v1055 = vadd.f32 %v1054, 1.0
      %v1056 = vrcp.pop %v1055
      %v1057 = vmul.f32 1.0, %v1056
      %v1058 = vtanh.pop %v1051
      %1060 = vrot.lane.b32.xlu0 %v974, 32
      %v1061 = vpop.permute.xlu0 %1060
      %v1063 = vmul.f32 %v1057, %v1061
      %1065 = vrot.lane.b32.xlu0 %v1058, 64
      %v1066 = vpop.permute.xlu0 %1065
      %v1068 = vmul.f32 %v1057, %v1066
      %1070 = vrot.lane.b32.xlu0 %v1068, 32
      %v1071 = vpop.permute.xlu0 %1070
      %v1073 = vadd.f32 %v1063, %v1071
      %v1074 = vtanh.pop %v1073
      %1076 = vrot.lane.b32.xlu0 %v1074, 64
      %v1077 = vpop.permute.xlu0 %1076
      %v1079 = vmul.f32 %v1057, %v1077
      %1081 = vrot.lane.b32.xlu0 %v1073, 96
      %v1082 = vpop.permute.xlu0 %1081
      %1084 = vst.msk [vmem:[#allocation3] sm:$0xff] %vm257, %v1082
      %1086 = vrot.lane.b32.xlu0 %v1079, 32
      %v1087 = vpop.permute.xlu0 %1086
      %1089 = vst.msk [vmem:[#allocation2] sm:$0xff] %vm257, %v1087
      %s1090 = scalar_lea.vmem %s234, %s975
      %1091 = vst.msk [vmem:[%s1090] sm:$0xff] %vm257, %v1087
      %s1092 = scalar_select %p250, 7, 0
      %v1093 = vld [vmem:[#allocation2] sm:$0xff]
      %v1094 = vld [vmem:[#allocation3] sm:$0xff]
      %s1095 = smul.u32 %s1092, 8
      %s1096 = scalar_lea.vmem %s213, %s1095
      %v1097 = vld [vmem:[%s1096] sm:$0xff]
      %v1099 = vsel %vm257, %v1093, 0
      %1101 = vmatprep.subr.mxu0 0.0
      %1102 = vmatpush1.msra.mxu0 %v246
      %1103 = vmatprep.subr.mxu0 0.0
      %1104 = vmatpush1.msra.mxu0 %v247
      %1105 = vmatprep.subr.mxu0 0.0
      %1106 = vmatpush1.msra.mxu0 %v248
      %1107 = vmatprep.subr.mxu0 0.0
      %1108 = vmatpush1.msra.mxu0 %v249
      %1109 = vmatprep.subr.mxu0 0.0
      %1110 = vmatpush1.msra.mxu0 0.0
      %1111 = vmatprep.subr.mxu0 0.0
      %1112 = vmatpush1.msra.mxu0 0.0
      %1113 = vmatprep.subr.mxu0 0.0
      %1114 = vmatpush1.msra.mxu0 0.0
      %1115 = vmatprep.subr.mxu0 0.0
      %1116 = vmatpush1.msra.mxu0 0.0
      %1117 = vmatprep.subr.mxu0 0.0
      %1118 = vmatpush1.msra.mxu0 0.0
      %1119 = vmatprep.subr.mxu0 0.0
      %1120 = vmatpush1.msra.mxu0 0.0
      %1121 = vmatprep.subr.mxu0 0.0
      %1122 = vmatpush1.msra.mxu0 0.0
      %1123 = vmatprep.subr.mxu0 0.0
      %1124 = vmatpush1.msra.mxu0 0.0
      %1125 = vmatprep.subr.mxu0 0.0
      %1126 = vmatpush1.msra.mxu0 0.0
      %1127 = vmatprep.subr.mxu0 0.0
      %1128 = vmatpush1.msra.mxu0 0.0
      %1129 = vmatprep.subr.mxu0 0.0
      %1130 = vmatpush1.msra.mxu0 0.0
      %1131 = vmatprep.subr.mxu0 0.0
      %1132 = vmatpush1.msra.mxu0 0.0
      %1133 = vmatprep.subr.mxu0 0.0
      %1134 = vmatpush1.msra.mxu0 0.0
      %1135 = vmatprep.subr.mxu0 0.0
      %1136 = vmatpush1.msra.mxu0 0.0
      %1137 = vmatprep.subr.mxu0 0.0
      %1138 = vmatpush1.msra.mxu0 0.0
      %1139 = vmatprep.subr.mxu0 0.0
      %1140 = vmatpush1.msra.mxu0 0.0
      %1141 = vmatprep.subr.mxu0 0.0
      %1142 = vmatpush1.msra.mxu0 0.0
      %1143 = vmatprep.subr.mxu0 0.0
      %1144 = vmatpush1.msra.mxu0 0.0
      %1145 = vmatprep.subr.mxu0 0.0
      %1146 = vmatpush1.msra.mxu0 0.0
      %1147 = vmatprep.subr.mxu0 0.0
      %1148 = vmatpush1.msra.mxu0 0.0
      %1149 = vmatprep.subr.mxu0 0.0
      %1150 = vmatpush1.msra.mxu0 0.0
      %1151 = vmatprep.subr.mxu0 0.0
      %1152 = vmatpush1.msra.mxu0 0.0
      %1153 = vmatprep.subr.mxu0 0.0
      %1154 = vmatpush1.msra.mxu0 0.0
      %1155 = vmatprep.subr.mxu0 0.0
      %1156 = vmatpush1.msra.mxu0 0.0
      %1157 = vmatprep.subr.mxu0 0.0
      %1158 = vmatpush1.msra.mxu0 0.0
      %1159 = vmatprep.subr.mxu0 0.0
      %1160 = vmatpush1.msra.mxu0 0.0
      %1161 = vmatprep.subr.mxu0 0.0
      %1162 = vmatpush1.msra.mxu0 0.0
      %1163 = vmatprep.subr.mxu0 0.0
      %1164 = vmatpush1.msra.mxu0 0.0
      %1165 = vmatprep.mubr.f32.mxu0 0.0
      %1166 = vmatmul.mubr.f32.gmra.mrb[0].mxu0 %v1099
      %v1167 = vpop.f32.mrb[0].mxu0
      %v1168 = vadd.f32 0.0, %v1167
      %v1169 = vpop.f32.mrb[0].mxu0
      %1170 = vdwg.mxu0
      %v1171 = vadd.f32 %v1097, %v1168
      %v1172 = vxor.u32 %v1171, 2147483648
      %v1173 = vmul.f32 %v1172, 1.442695
      %v1174 = vpow.pop %v1173
      %v1175 = vadd.f32 %v1174, 1.0
      %v1176 = vrcp.pop %v1175
      %v1177 = vmul.f32 1.0, %v1176
      %v1178 = vtanh.pop %v1171
      %1180 = vrot.lane.b32.xlu0 %v1094, 32
      %v1181 = vpop.permute.xlu0 %1180
      %v1183 = vmul.f32 %v1177, %v1181
      %1185 = vrot.lane.b32.xlu0 %v1178, 64
      %v1186 = vpop.permute.xlu0 %1185
      %v1188 = vmul.f32 %v1177, %v1186
      %1190 = vrot.lane.b32.xlu0 %v1188, 32
      %v1191 = vpop.permute.xlu0 %1190
      %v1193 = vadd.f32 %v1183, %v1191
      %v1194 = vtanh.pop %v1193
      %1196 = vrot.lane.b32.xlu0 %v1194, 64
      %v1197 = vpop.permute.xlu0 %1196
      %v1199 = vmul.f32 %v1177, %v1197
      %1201 = vrot.lane.b32.xlu0 %v1193, 96
      %v1202 = vpop.permute.xlu0 %1201
      %1204 = vst.msk [vmem:[#allocation3] sm:$0xff] %vm257, %v1202
      %1206 = vrot.lane.b32.xlu0 %v1199, 32
      %v1207 = vpop.permute.xlu0 %1206
      %1209 = vst.msk [vmem:[#allocation2] sm:$0xff] %vm257, %v1207
      %s1210 = scalar_lea.vmem %s234, %s1095
      %1211 = vst.msk [vmem:[%s1210] sm:$0xff] %vm257, %v1207
      %p1212 = scmp.eq.s32.totalorder %s17, 0
      %s1213 = ssub.s32 0, %s18
      %s1214 = scalar_select %p1212, %s18, %s1213
      %s1215 = smul.u32 8, %s1214
      %p1216 = scmp.lt.s32.totalorder %s17, 1
      %s1217 = scalar_select %p1216, %s17, 1
      %p1218 = scmp.lt.s32.totalorder %s1215, 7
      %s1219 = scalar_select %p1218, %s1215, 7
      %s1220 = smul.addr %s1217, 8
      %s1221 = sadd.s32 %s1219, %s1220
      %s1222 = smul.addr %s1221, 8
      %s1223 = scalar_lea.vmem %s2, %s1222
      // Predicated region
      $region33: #{bilstm_encoder_forward.2} parent=27 // pred_check
        %p1224 = pneg %p111
      $region34: #{bilstm_encoder_forward.2} parent=27 // pred_check_branch
        %1226 = sbr.rel (%p1224) target = $region36
      $region35: #{bilstm_encoder_forward.2} parent=27 // pred_region
        %p1227 = scmp.eq.s32.totalorder %s17, 0
        %s1228 = ssub.s32 0, %s18
        %s1229 = scalar_select %p1227, %s18, %s1228
        %s1230 = smul.u32 8, %s1229
      $region36: #{bilstm_encoder_forward.2} parent=27 // pred_fallthru
        _
    $region28: #{bilstm_encoder_forward.2} parent=5 // pred_fallthru
      _
    %p1231 = scmp.le.s32.totalorder 2, %s8
    // Predicated region
    $region37: #{bilstm_encoder_forward.2} parent=5 // pred_check
      %p1232 = pneg %p1231
    $region38: #{bilstm_encoder_forward.2} parent=5 // pred_check_branch
      %1234 = sbr.rel (%p1232) target = $region40
    $region39: #{bilstm_encoder_forward.2} parent=5 // pred_region
      %s1235 = ssub.s32 %s8, 2
      // Predicated region
      $region41: #{bilstm_encoder_forward.2} parent=39 // pred_check
        %p1236 = pneg %p117
      $region42: #{bilstm_encoder_forward.2} parent=39 // pred_check_branch
        %1238 = sbr.rel (%p1236) target = $region44
      $region43: #{bilstm_encoder_forward.2} parent=39 // pred_region
        %p1239 = scmp.eq.s32.totalorder %s19, 0
        %s1240 = ssub.s32 0, %s20
        %s1241 = scalar_select %p1239, %s20, %s1240
        %s1242 = smul.u32 8, %s1241
        %p1243 = scmp.lt.s32.totalorder %s19, 1
        %s1244 = scalar_select %p1243, %s19, 1
        %p1245 = scmp.lt.s32.totalorder %s1242, 7
        %s1246 = scalar_select %p1245, %s1242, 7
        %s1247 = smul.addr %s1244, 8
        %s1248 = sadd.s32 %s1246, %s1247
        %s1249 = smul.addr %s1248, 8
        %s1250 = scalar_lea.vmem %s2, %s1249
      $region44: #{bilstm_encoder_forward.2} parent=39 // pred_fallthru
        _
    $region40: #{bilstm_encoder_forward.2} parent=5 // pred_fallthru
      _
  $region6: #{bilstm_encoder_forward.2} parent=0 // loop_footer
    %s12 = sadd.s32 1, %s8
  $region7: #{bilstm_encoder_forward.2} parent=0 // loop_footer_branch
    %7 = sbr.rel target = $region3
  $region8: #{bilstm_encoder_forward.2} parent=0 // loop_exit
    _

</llo_original>
